<compile_context>
chip_gen: v7x
topology: tpu7x:2x2x1
jax: 0.10.0
libtpu: 0.0.40
codegen_flags: <defaults>
</compile_context>

<pallas_src>
import functools

import jax
import jax.numpy as jnp
from jax.experimental import pallas as pl
from jax.experimental.pallas import tpu as pltpu


def _leaky_relu(z, slope=0.2):
    return jnp.where(z >= 0, z, slope * z)


def heavy_da_kernel(x_ref, wa_ref, wb_ref, bi_ref, wf_ref, bif_ref, o_ref,
                    feats_ref, dlhs_ref, *,
                    k, num_layers, row_tile, group, n_real, compute_dtype):
    """Fused HeavyDA forward for one batch element.

    x_ref    : (1, Np, C)   zero-padded input features (channels last), f32
    wa_ref   : (L, C, C)    neighbor-term 1x1-conv weight (transposed, BN2d folded)
    wb_ref   : (L, C, C)    center-term weight (W_center - W_neighbor, BN2d folded)
    bi_ref   : (L, C)       folded BN2d bias, f32
    wf_ref   : (L*C, O)     final Conv1d weight (transposed, BN1d scale folded)
    bif_ref  : (1, O)       folded BN1d bias, f32
    o_ref    : (1, 1, O)    output, f32
    feats_ref: (L, Np, C)   per-layer output features (VMEM scratch, f32)
    dlhs_ref : (Np, C+1)    distance-matmul LHS [x | 1] (VMEM scratch, compute dtype)
    """
    Np, C = feats_ref.shape[1], feats_ref.shape[2]
    O = o_ref.shape[-1]
    TR = row_tile
    n_tiles = Np // TR
    padded = Np != n_real

    # int32 bit-trick constants: single-reduction top-k w/ lowest-index tie-break.
    nbits = max((Np - 1).bit_length(), 1)
    high_mask = jnp.int32(~((1 << nbits) - 1))
    sign_mask = jnp.int32(0x7FFFFFFF)
    int_min = jnp.int32(-(2 ** 31))

    # Hoisted constants shared by every (layer, tile) pair (JAX does not CSE iota).
    col = jax.lax.broadcasted_iota(jnp.int32, (TR, Np), 1)
    colcode = jnp.int32(Np - 1) - col                      # low bits of the packed key
    col_is_pad = (col >= n_real) if padded else None       # never select zero-padded points
    ones_col = jnp.ones((Np, 1), jnp.float32)
    row_iota = jax.lax.broadcasted_iota(jnp.int32, (TR, 1), 0)

    for layer in range(num_layers):
        x = x_ref[0] if layer == 0 else feats_ref[layer - 1, :, :]      # (Np, C) f32
        x_cd = x.astype(compute_dtype)

        # Distance epilogue folded into the MXU (see module header).
        sq = jnp.sum(x * x, axis=-1, keepdims=True)                     # (Np, 1)
        drhs = jnp.concatenate([x + x, -sq], axis=1).astype(compute_dtype)   # (Np, C+1)
        dlhs_ref[...] = jnp.concatenate([x, ones_col], axis=1).astype(compute_dtype)

        # BN-scale-folded 1x1 conv; wa/wb separate so nothing crosses a lane boundary.
        a = jnp.dot(x_cd, wa_ref[layer],
                    preferred_element_type=jnp.float32).astype(compute_dtype)   # gather RHS
        b_all = jnp.dot(x_cd, wb_ref[layer],
                        preferred_element_type=jnp.float32) + bi_ref[layer][None, :]

        def tile_body(t, carry):
            r0 = pl.multiple_of(t * TR, TR)
            lhs_t = dlhs_ref[pl.ds(r0, TR), :]                           # (TR, C+1)
            d = jax.lax.dot_general(lhs_t, drhs, (((1,), (1,)), ((), ())),
                                    preferred_element_type=jnp.float32)  # (TR, Np) f32

            # Pack (distance, lowest-index tie-break) into one orderable int32 key.
            bits = pltpu.bitcast(d, jnp.int32)
            ordv = jnp.where(bits >= 0, bits, bits ^ sign_mask)          # monotone f32 -> i32
            key = (ordv & high_mask) | colcode
            if padded:
                key = jnp.where(col_is_pad, int_min, key)

            # Grouped top-k gather: `group` selection rounds, then ONE MXU matmul.
            amax = None
            for start in range(0, k, group):
                rounds = min(group, k - start)
                hits = []
                for _ in range(rounds):
                    rowmax = jnp.max(key, axis=-1, keepdims=True)        # single cross-lane reduce
                    hit = key == rowmax                                  # exact one-hot (keys distinct)
                    hits.append(hit.astype(compute_dtype))
                    key = jnp.where(hit, int_min, key)                   # mask selected neighbor
                hmat = hits[0] if rounds == 1 else jnp.concatenate(hits, axis=0)
                gath = jnp.dot(hmat, a, preferred_element_type=jnp.float32)   # (rounds*TR, C)
                gmax = gath[:TR, :]
                for r in range(1, rounds):
                    gmax = jnp.maximum(gmax, gath[r * TR:(r + 1) * TR, :])
                amax = gmax if amax is None else jnp.maximum(amax, gmax)

            # LeakyReLU is monotone, so bias + activation are applied once per
            # layer after the neighbor max (below); only the max is stored here.
            feats_ref[layer, pl.ds(r0, TR), :] = amax
            return carry

        jax.lax.fori_loop(0, n_tiles, tile_body, jnp.int32(0))

        # center term + folded BN bias + LeakyReLU (one full-array pass).
        feats_ref[layer, :, :] = _leaky_relu(feats_ref[layer, :, :] + b_all)

    # Final 1x1 conv over the lane-concat of all layer outputs, fused with
    # LeakyReLU and the max over points; only a (1, O) running max stays resident.
    wf = wf_ref[...]
    bias_f = bif_ref[0][None, :]

    def fin_body(t, run):
        r0 = pl.multiple_of(t * TR, TR)
        cat = jnp.concatenate(
            [feats_ref[ly, pl.ds(r0, TR), :] for ly in range(num_layers)], axis=1)
        zf = jnp.dot(cat.astype(compute_dtype), wf,
                     preferred_element_type=jnp.float32) + bias_f        # (TR, O)
        zf = _leaky_relu(zf)
        if padded:
            zf = jnp.where(r0 + row_iota < n_real, zf, -jnp.inf)         # drop padded rows
        return jnp.maximum(run, jnp.max(zf, axis=0, keepdims=True))

    omax = jax.lax.fori_loop(0, n_tiles, fin_body,
                             jnp.full((1, O), -jnp.inf, jnp.float32))
    o_ref[...] = omax[None]


def _roundup(a, m):
    return ((a + m - 1) // m) * m


def _vmem_estimate(n_pad, C, L, O, rt, g, itemsize):
    """Rough per-core VMEM footprint (bytes) for a (row_tile, group) choice."""
    c1 = C + 1
    io = 2 * n_pad * C * 4 + 2 * O * 4                                    # buffered input/output
    wts = 2 * (2 * L * C * C + L * C * O) * itemsize + 2 * (L * C + O) * 4
    scratch = L * n_pad * C * 4 + n_pad * c1 * itemsize                   # feats + distance LHS
    per_layer = n_pad * c1 * (12 + 3 * itemsize)                          # x / a / b / drhs temporaries
    per_tile = rt * n_pad * (24 + 2 * g * itemsize) + 8 * g * rt * C      # keys/dist + hit slabs
    return int(1.25 * (io + wts + scratch + per_layer + per_tile))


def _select_config(N, C, L, O, k, itemsize):
    """Generation-aware row-tile / gather-group / VMEM-limit selection."""
    try:
        cap = int(getattr(pltpu.get_tpu_info(), "vmem_capacity_bytes", 64 * 2 ** 20))
    except Exception:
        cap = 64 * 2 ** 20
    budget = min(100 * 2 ** 20, (cap * 3) // 4)       # ~96 MiB on v5e/v6e, ~48 MiB on v7x
    big_vmem = cap >= 100 * 2 ** 20
    rt_max = 512 if big_vmem else 256
    g_max = min(k, 8 if big_vmem else 4)
    for rt in (512, 256, 128, 64, 32, 16, 8):
        if rt > rt_max:
            continue
        rt_eff = min(rt, _roundup(N, 8))
        n_pad = _roundup(N, rt_eff)
        g = max(1, g_max)
        while True:
            if _vmem_estimate(n_pad, C, L, O, rt_eff, g, itemsize) <= budget:
                return rt_eff, n_pad, g, budget
            if g == 1:
                break
            g //= 2
    rt_eff = min(32, _roundup(N, 8))
    return rt_eff, _roundup(N, rt_eff), 1, budget


@functools.partial(jax.jit, static_argnames=(
    "k", "row_tile", "n_pad", "group", "vmem_limit", "compute_dtype"))
def _heavy_da_call(x, wa, wb, bi, wf, bif, *, k, row_tile, n_pad, group,
                   vmem_limit, compute_dtype):
    B, N, C = x.shape
    L = wa.shape[0]
    O = bif.shape[-1]
    if n_pad > N:
        x = jnp.pad(x, ((0, 0), (0, n_pad - N), (0, 0)))
    wa = wa.astype(compute_dtype)
    wb = wb.astype(compute_dtype)
    wf = wf.astype(compute_dtype)

    kernel = functools.partial(heavy_da_kernel, k=k, num_layers=L,
                               row_tile=row_tile, group=group, n_real=N,
                               compute_dtype=compute_dtype)
    out = pl.pallas_call(
        kernel,
        out_shape=jax.ShapeDtypeStruct((B, 1, O), jnp.float32),
        grid_spec=pltpu.PrefetchScalarGridSpec(
            num_scalar_prefetch=0,
            grid=(B,),
            in_specs=[
                pl.BlockSpec((1, n_pad, C), lambda b: (b, 0, 0)),   # x (per batch element)
                pl.BlockSpec((L, C, C), lambda b: (0, 0, 0)),       # neighbor-term weights
                pl.BlockSpec((L, C, C), lambda b: (0, 0, 0)),       # center-term weights
                pl.BlockSpec((L, C), lambda b: (0, 0)),             # folded BN2d bias
                pl.BlockSpec((L * C, O), lambda b: (0, 0)),         # final conv weight
                pl.BlockSpec((1, O), lambda b: (0, 0)),             # folded BN1d bias
            ],
            out_specs=pl.BlockSpec((1, 1, O), lambda b: (b, 0, 0)),
            scratch_shapes=[
                pltpu.VMEM((L, n_pad, C), jnp.float32),             # per-layer outputs
                pltpu.VMEM((n_pad, C + 1), compute_dtype),          # distance-matmul LHS
            ],
        ),
        compiler_params=pltpu.CompilerParams(
            dimension_semantics=("parallel",),
            vmem_limit_bytes=vmem_limit,
        ),
    )(x, wa, wb, bi, wf, bif)
    return out[:, 0, :]                                             # (B, O)


def heavy_da_pallas(x, packed, *, k, compute_dtype=jnp.bfloat16):
    B, N, C = x.shape
    L = packed["wa"].shape[0]
    O = packed["bif"].shape[-1]
    assert 1 <= k <= N, "require 1 <= k <= num_points"
    itemsize = jnp.dtype(compute_dtype).itemsize
    row_tile, n_pad, group, vmem_limit = _select_config(N, C, L, O, k, itemsize)
    return _heavy_da_call(x, packed["wa"], packed["wb"], packed["bi"],
                          packed["wf"], packed["bif"],
                          k=k, row_tile=row_tile, n_pad=n_pad, group=group,
                          vmem_limit=vmem_limit, compute_dtype=compute_dtype)


def make_params(key, in_dim, out_dim, num_layers):
    """Deterministic synthetic params; eval-mode BN scale folded into the weights."""
    C, O, L, eps = in_dim, out_dim, num_layers, 1e-5
    ks = iter(jax.random.split(key, 5 * L + 5))
    wa, wb, bi, layers_raw = [], [], [], []
    for _ in range(L):
        W = jax.random.normal(next(ks), (C, 2 * C), jnp.float32) * 0.2   # Conv2d (out, 2C)
        gamma = jax.random.uniform(next(ks), (C,), jnp.float32, 0.5, 1.5)
        beta = jax.random.normal(next(ks), (C,), jnp.float32) * 0.1
        mean = jax.random.normal(next(ks), (C,), jnp.float32) * 0.1
        var = jax.random.uniform(next(ks), (C,), jnp.float32, 0.5, 1.5)
        scale = gamma / jnp.sqrt(var + eps)
        bias = beta - mean * scale
        layers_raw.append((W, scale, bias))
        wa.append(W[:, :C].T * scale[None, :])                  # neighbor weight, BN folded
        wb.append((W[:, C:] - W[:, :C]).T * scale[None, :])     # center weight, BN folded
        bi.append(bias)
    Wf = jax.random.normal(next(ks), (O, L * C), jnp.float32) * 0.2      # Conv1d (O, L*C)
    gamma = jax.random.uniform(next(ks), (O,), jnp.float32, 0.5, 1.5)
    beta = jax.random.normal(next(ks), (O,), jnp.float32) * 0.1
    mean = jax.random.normal(next(ks), (O,), jnp.float32) * 0.1
    var = jax.random.uniform(next(ks), (O,), jnp.float32, 0.5, 1.5)
    scale_f = gamma / jnp.sqrt(var + eps)
    bias_f = beta - mean * scale_f
    wf = (Wf * scale_f[:, None]).T                                       # (L*C, O)
    packed = dict(wa=jnp.stack(wa), wb=jnp.stack(wb), bi=jnp.stack(bi),
                  wf=wf, bif=bias_f[None, :])
    raw = dict(layers=layers_raw, final=(Wf, scale_f, bias_f))
    return packed, raw


def heavy_da_reference(x, raw, k):
    """Pure-JAX reference mirroring the PyTorch forward (channels-last)."""
    feats = x.astype(jnp.float32)                                        # (B, N, C)
    outs = []
    for (W, scale, bias) in raw["layers"]:
        f = feats
        sq = jnp.sum(f * f, axis=-1)
        inner = jnp.einsum("bnc,bmc->bnm", f, f)
        dist = 2.0 * inner - sq[:, :, None] - sq[:, None, :]
        idx = jax.lax.top_k(dist, k)[1]                                  # (B, N, k)
        nbr = jax.vmap(lambda fb, ib: fb[ib])(f, idx)                    # (B, N, k, C)
        center = jnp.broadcast_to(f[:, :, None, :], nbr.shape)
        edge = jnp.concatenate([nbr - center, center], axis=-1)          # (B, N, k, 2C)
        z = jnp.einsum("bnke,oe->bnko", edge, W) * scale + bias
        feats = jnp.max(_leaky_relu(z), axis=2)                          # (B, N, C)
        outs.append(feats)
    Wf, scale_f, bias_f = raw["final"]
    cat = jnp.concatenate(outs, axis=-1)                                 # (B, N, L*C)
    z = jnp.einsum("bnc,oc->bno", cat, Wf) * scale_f + bias_f
    return jnp.max(_leaky_relu(z), axis=1)                               # (B, O)


if __name__ == "__main__":
    B, N, in_dim, out_dim, k, num_layers = 2, 16, 8, 16, 4, 3
    key = jax.random.PRNGKey(0)
    kx, kp = jax.random.split(key)
    x = jax.random.normal(kx, (B, N, in_dim), jnp.float32)   # (batch, points, channels)
    packed, raw = make_params(kp, in_dim, out_dim, num_layers)

    # f32-MXU path: strict check against the pure-JAX reference (identical kNN graph).
    out = heavy_da_pallas(x, packed, k=k, compute_dtype=jnp.float32)
    out = jax.block_until_ready(out)
    assert out.shape == (B, out_dim)
    ref = heavy_da_reference(x, raw, k)
    err = float(jnp.max(jnp.abs(out - ref)))
    if not jnp.allclose(out, ref, atol=3e-2, rtol=3e-2):
        raise SystemExit(f"mismatch vs reference: max abs err = {err}")

    # bf16-MXU production path: smoke run only (bf16 feature rounding can legitimately
    # flip near-tie kNN picks vs the f32 reference, so no strict element-wise check).
    out_bf16 = jax.block_until_ready(
        heavy_da_pallas(x, packed, k=k, compute_dtype=jnp.bfloat16))
    assert out_bf16.shape == (B, out_dim)
    assert bool(jnp.all(jnp.isfinite(out_bf16)))

    print("KERNEL_OK")
</pallas_src>

<mosaic_0001>
module attributes {stable_mosaic.version = 11 : i64} {
  func.func @heavy_da_kernel(%arg0: i32, %arg1: memref<1x16x8xf32, #tpu.memory_space<vmem>>, %arg2: memref<3x8x8xf32, #tpu.memory_space<vmem>>, %arg3: memref<3x8x8xf32, #tpu.memory_space<vmem>>, %arg4: memref<3x8xf32, #tpu.memory_space<vmem>>, %arg5: memref<24x16xf32, #tpu.memory_space<vmem>>, %arg6: memref<1x16xf32, #tpu.memory_space<vmem>>, %arg7: memref<1x1x16xf32, #tpu.memory_space<vmem>>, %arg8: memref<3x16x8xf32, #tpu.memory_space<vmem>>, %arg9: memref<16x9xf32, #tpu.memory_space<vmem>>) attributes {dimension_semantics = [#tpu.dimension_semantics<parallel>], iteration_bounds = array<i64: 2>, scalar_prefetch = 0 : i64, scratch_operands = 2 : i64, tpu.core_type = #tpu.core_type<tc>, window_params = [{transform_indices = @transform_0, window_bounds = array<i64: 1, 16, 8>}, {pipeline_mode = #tpu.pipeline_mode<synchronous>, transform_indices = @transform_1, window_bounds = array<i64: 3, 8, 8>}, {pipeline_mode = #tpu.pipeline_mode<synchronous>, transform_indices = @transform_2, window_bounds = array<i64: 3, 8, 8>}, {pipeline_mode = #tpu.pipeline_mode<synchronous>, transform_indices = @transform_3, window_bounds = array<i64: 3, 8>}, {pipeline_mode = #tpu.pipeline_mode<synchronous>, transform_indices = @transform_4, window_bounds = array<i64: 24, 16>}, {pipeline_mode = #tpu.pipeline_mode<synchronous>, transform_indices = @transform_5, window_bounds = array<i64: 1, 16>}, {transform_indices = @transform_6, window_bounds = array<i64: 1, 1, 16>}]} {
    %0 = tpu.iota {dimensions = array<i32: 1>} : vector<16x16xi32>
    %c15_i32 = arith.constant 15 : i32
    %1 = vector.broadcast %c15_i32 : i32 to vector<16x16xi32>
    %2 = arith.subi %1, %0 : vector<16x16xi32>
    %cst = arith.constant 1.000000e+00 : f32
    %3 = vector.broadcast %cst : f32 to vector<16x1xf32>
    %c0 = arith.constant 0 : index
    %c0_0 = arith.constant 0 : index
    %c0_1 = arith.constant 0 : index
    %4 = vector.load %arg1[%c0, %c0_0, %c0_1] : memref<1x16x8xf32, #tpu.memory_space<vmem>>, vector<1x16x8xf32>
    %5 = vector.shape_cast %4 : vector<1x16x8xf32> to vector<16x8xf32>
    %6 = arith.mulf %5, %5 : vector<16x8xf32>
    %cst_2 = arith.constant dense<0.000000e+00> : vector<16xf32>
    %7 = vector.multi_reduction <add>, %6, %cst_2 [1] : vector<16x8xf32> to vector<16xf32>
    %8 = vector.shape_cast %7 : vector<16xf32> to vector<16x1xf32>
    %9 = arith.addf %5, %5 : vector<16x8xf32>
    %cst_3 = arith.constant 0.000000e+00 : f32
    %10 = vector.broadcast %cst_3 : f32 to vector<16x1xf32>
    %11 = arith.subf %10, %8 : vector<16x1xf32>
    %12 = tpu.concatenate %9, %11 in 1 : vector<16x8xf32>, vector<16x1xf32> -> vector<16x9xf32>
    %13 = tpu.concatenate %5, %3 in 1 : vector<16x8xf32>, vector<16x1xf32> -> vector<16x9xf32>
    %c0_4 = arith.constant 0 : index
    %c0_5 = arith.constant 0 : index
    %14 = vector.load %arg9[%c0_4, %c0_5] : memref<16x9xf32, #tpu.memory_space<vmem>>, vector<16x9xf32>
    tpu.vector_store %arg9[%c0_4, %c0_5], %13 {strides = array<i32>} : memref<16x9xf32, #tpu.memory_space<vmem>>, vector<16x9xf32>,
    %c0_6 = arith.constant 0 : index
    %c0_7 = arith.constant 0 : index
    %c0_8 = arith.constant 0 : index
    %15 = vector.load %arg2[%c0_6, %c0_7, %c0_8] : memref<3x8x8xf32, #tpu.memory_space<vmem>>, vector<1x8x8xf32>
    %16 = vector.shape_cast %15 : vector<1x8x8xf32> to vector<8x8xf32>
    %cst_9 = arith.constant dense<0.000000e+00> : vector<16x8xf32>
    %17 = tpu.matmul %5, %16, %cst_9 {dimension_numbers = #tpu.dot_dimension_numbers<[1], [0], [0], [1], [0, 0, 1, 1], [], []>} : vector<16x8xf32>, vector<8x8xf32>, vector<16x8xf32> -> vector<16x8xf32>
    %c0_10 = arith.constant 0 : index
    %c0_11 = arith.constant 0 : index
    %c0_12 = arith.constant 0 : index
    %18 = vector.load %arg3[%c0_10, %c0_11, %c0_12] : memref<3x8x8xf32, #tpu.memory_space<vmem>>, vector<1x8x8xf32>
    %19 = vector.shape_cast %18 : vector<1x8x8xf32> to vector<8x8xf32>
    %cst_13 = arith.constant dense<0.000000e+00> : vector<16x8xf32>
    %20 = tpu.matmul %5, %19, %cst_13 {dimension_numbers = #tpu.dot_dimension_numbers<[1], [0], [0], [1], [0, 0, 1, 1], [], []>} : vector<16x8xf32>, vector<8x8xf32>, vector<16x8xf32> -> vector<16x8xf32>
    %c0_14 = arith.constant 0 : index
    %c0_15 = arith.constant 0 : index
    %21 = vector.load %arg4[%c0_14, %c0_15] : memref<3x8xf32, #tpu.memory_space<vmem>>, vector<1x8xf32>
    %22 = vector.shape_cast %21 : vector<1x8xf32> to vector<8xf32>
    %23 = vector.shape_cast %22 : vector<8xf32> to vector<1x8xf32>
    %24 = vector.broadcast %23 : vector<1x8xf32> to vector<16x8xf32>
    %25 = arith.addf %20, %24 : vector<16x8xf32>
    %c2147483647_i32 = arith.constant 2147483647 : i32
    %c-16_i32 = arith.constant -16 : i32
    %c-2147483648_i32 = arith.constant -2147483648 : i32
    %c0_i32 = arith.constant 0 : i32
    %c16_i32 = arith.constant 16 : i32
    %26 = arith.muli %c0_i32, %c16_i32 : i32
    %27 = tpu.assume_multiple %26, 16 : i32
    %28 = arith.index_cast %27 : i32 to index
    %c0_16 = arith.constant 0 : index
    %29 = vector.load %arg9[%28, %c0_16] : memref<16x9xf32, #tpu.memory_space<vmem>>, vector<16x9xf32>
    %cst_17 = arith.constant dense<0.000000e+00> : vector<16x16xf32>
    %30 = tpu.matmul %29, %12, %cst_17 {dimension_numbers = #tpu.dot_dimension_numbers<[1], [1], [0], [0], [0, 0, 1, 0], [], []>} : vector<16x9xf32>, vector<16x9xf32>, vector<16x16xf32> -> vector<16x16xf32>
    %31 = tpu.bitcast %30 : vector<16x16xf32> -> vector<16x16xi32>
    %c0_i32_18 = arith.constant 0 : i32
    %32 = vector.broadcast %c0_i32_18 : i32 to vector<16x16xi32>
    %33 = arith.cmpi sge, %31, %32 : vector<16x16xi32>
    %34 = vector.broadcast %c2147483647_i32 : i32 to vector<16x16xi32>
    %35 = arith.xori %31, %34 : vector<16x16xi32>
    %36 = arith.select %33, %31, %35 : vector<16x16xi1>, vector<16x16xi32>
    %37 = vector.broadcast %c-16_i32 : i32 to vector<16x16xi32>
    %38 = arith.andi %36, %37 : vector<16x16xi32>
    %39 = arith.ori %38, %2 : vector<16x16xi32>
    %cst_19 = arith.constant dense<-2147483648> : vector<16xi32>
    %40 = vector.multi_reduction <maxsi>, %39, %cst_19 [1] : vector<16x16xi32> to vector<16xi32>
    %41 = vector.shape_cast %40 : vector<16xi32> to vector<16x1xi32>
    %42 = vector.broadcast %41 : vector<16x1xi32> to vector<16x16xi32>
    %43 = arith.cmpi eq, %39, %42 : vector<16x16xi32>
    %44 = arith.extui %43 : vector<16x16xi1> to vector<16x16xi32>
    %45 = arith.sitofp %44 : vector<16x16xi32> to vector<16x16xf32>
    %46 = vector.broadcast %c-2147483648_i32 : i32 to vector<16x16xi32>
    %47 = arith.select %43, %46, %39 : vector<16x16xi1>, vector<16x16xi32>
    %cst_20 = arith.constant dense<-2147483648> : vector<16xi32>
    %48 = vector.multi_reduction <maxsi>, %47, %cst_20 [1] : vector<16x16xi32> to vector<16xi32>
    %49 = vector.shape_cast %48 : vector<16xi32> to vector<16x1xi32>
    %50 = vector.broadcast %49 : vector<16x1xi32> to vector<16x16xi32>
    %51 = arith.cmpi eq, %47, %50 : vector<16x16xi32>
    %52 = arith.extui %51 : vector<16x16xi1> to vector<16x16xi32>
    %53 = arith.sitofp %52 : vector<16x16xi32> to vector<16x16xf32>
    %54 = vector.broadcast %c-2147483648_i32 : i32 to vector<16x16xi32>
    %55 = arith.select %51, %54, %47 : vector<16x16xi1>, vector<16x16xi32>
    %cst_21 = arith.constant dense<-2147483648> : vector<16xi32>
    %56 = vector.multi_reduction <maxsi>, %55, %cst_21 [1] : vector<16x16xi32> to vector<16xi32>
    %57 = vector.shape_cast %56 : vector<16xi32> to vector<16x1xi32>
    %58 = vector.broadcast %57 : vector<16x1xi32> to vector<16x16xi32>
    %59 = arith.cmpi eq, %55, %58 : vector<16x16xi32>
    %60 = arith.extui %59 : vector<16x16xi1> to vector<16x16xi32>
    %61 = arith.sitofp %60 : vector<16x16xi32> to vector<16x16xf32>
    %62 = vector.broadcast %c-2147483648_i32 : i32 to vector<16x16xi32>
    %63 = arith.select %59, %62, %55 : vector<16x16xi1>, vector<16x16xi32>
    %cst_22 = arith.constant dense<-2147483648> : vector<16xi32>
    %64 = vector.multi_reduction <maxsi>, %63, %cst_22 [1] : vector<16x16xi32> to vector<16xi32>
    %65 = vector.shape_cast %64 : vector<16xi32> to vector<16x1xi32>
    %66 = vector.broadcast %65 : vector<16x1xi32> to vector<16x16xi32>
    %67 = arith.cmpi eq, %63, %66 : vector<16x16xi32>
    %68 = arith.extui %67 : vector<16x16xi1> to vector<16x16xi32>
    %69 = arith.sitofp %68 : vector<16x16xi32> to vector<16x16xf32>
    %70 = tpu.concatenate %45, %53, %61, %69 in 0 : vector<16x16xf32>, vector<16x16xf32>, vector<16x16xf32>, vector<16x16xf32> -> vector<64x16xf32>
    %cst_23 = arith.constant dense<0.000000e+00> : vector<64x8xf32>
    %71 = tpu.matmul %70, %17, %cst_23 {dimension_numbers = #tpu.dot_dimension_numbers<[1], [0], [0], [1], [0, 0, 1, 1], [], []>} : vector<64x16xf32>, vector<16x8xf32>, vector<64x8xf32> -> vector<64x8xf32>
    %72 = vector.extract_strided_slice %71 {offsets = [0, 0], sizes = [16, 8], strides = [1, 1]} : vector<64x8xf32> to vector<16x8xf32>
    %73 = vector.extract_strided_slice %71 {offsets = [16, 0], sizes = [16, 8], strides = [1, 1]} : vector<64x8xf32> to vector<16x8xf32>
    %74 = arith.maximumf %72, %73 : vector<16x8xf32>
    %75 = vector.extract_strided_slice %71 {offsets = [32, 0], sizes = [16, 8], strides = [1, 1]} : vector<64x8xf32> to vector<16x8xf32>
    %76 = arith.maximumf %74, %75 : vector<16x8xf32>
    %77 = vector.extract_strided_slice %71 {offsets = [48, 0], sizes = [16, 8], strides = [1, 1]} : vector<64x8xf32> to vector<16x8xf32>
    %78 = arith.maximumf %76, %77 : vector<16x8xf32>
    %c0_24 = arith.constant 0 : index
    %79 = arith.index_cast %27 : i32 to index
    %c0_25 = arith.constant 0 : index
    %80 = vector.load %arg8[%c0_24, %79, %c0_25] : memref<3x16x8xf32, #tpu.memory_space<vmem>>, vector<1x16x8xf32>
    %81 = vector.shape_cast %80 : vector<1x16x8xf32> to vector<16x8xf32>
    %82 = vector.shape_cast %78 : vector<16x8xf32> to vector<1x16x8xf32>
    tpu.vector_store %arg8[%c0_24, %79, %c0_25], %82 {strides = array<i32>} : memref<3x16x8xf32, #tpu.memory_space<vmem>>, vector<1x16x8xf32>,
    %c1_i32 = arith.constant 1 : i32
    %c0_26 = arith.constant 0 : index
    %c0_27 = arith.constant 0 : index
    %c0_28 = arith.constant 0 : index
    %83 = vector.load %arg8[%c0_26, %c0_27, %c0_28] : memref<3x16x8xf32, #tpu.memory_space<vmem>>, vector<1x16x8xf32>
    %84 = vector.shape_cast %83 : vector<1x16x8xf32> to vector<16x8xf32>
    %85 = arith.addf %84, %25 : vector<16x8xf32>
    %cst_29 = arith.constant 0.000000e+00 : f32
    %86 = vector.broadcast %cst_29 : f32 to vector<16x8xf32>
    %87 = arith.cmpf oge, %85, %86 : vector<16x8xf32>
    %cst_30 = arith.constant 2.000000e-01 : f32
    %88 = vector.broadcast %cst_30 : f32 to vector<16x8xf32>
    %89 = arith.mulf %88, %85 : vector<16x8xf32>
    %90 = arith.select %87, %85, %89 : vector<16x8xi1>, vector<16x8xf32>
    %c0_31 = arith.constant 0 : index
    %c0_32 = arith.constant 0 : index
    %c0_33 = arith.constant 0 : index
    %91 = vector.load %arg8[%c0_31, %c0_32, %c0_33] : memref<3x16x8xf32, #tpu.memory_space<vmem>>, vector<1x16x8xf32>
    %92 = vector.shape_cast %91 : vector<1x16x8xf32> to vector<16x8xf32>
    %93 = vector.shape_cast %90 : vector<16x8xf32> to vector<1x16x8xf32>
    tpu.vector_store %arg8[%c0_31, %c0_32, %c0_33], %93 {strides = array<i32>} : memref<3x16x8xf32, #tpu.memory_space<vmem>>, vector<1x16x8xf32>,
    %c0_34 = arith.constant 0 : index
    %c0_35 = arith.constant 0 : index
    %c0_36 = arith.constant 0 : index
    %94 = vector.load %arg8[%c0_34, %c0_35, %c0_36] : memref<3x16x8xf32, #tpu.memory_space<vmem>>, vector<1x16x8xf32>
    %95 = vector.shape_cast %94 : vector<1x16x8xf32> to vector<16x8xf32>
    %96 = arith.mulf %95, %95 : vector<16x8xf32>
    %cst_37 = arith.constant dense<0.000000e+00> : vector<16xf32>
    %97 = vector.multi_reduction <add>, %96, %cst_37 [1] : vector<16x8xf32> to vector<16xf32>
    %98 = vector.shape_cast %97 : vector<16xf32> to vector<16x1xf32>
    %99 = arith.addf %95, %95 : vector<16x8xf32>
    %cst_38 = arith.constant 0.000000e+00 : f32
    %100 = vector.broadcast %cst_38 : f32 to vector<16x1xf32>
    %101 = arith.subf %100, %98 : vector<16x1xf32>
    %102 = tpu.concatenate %99, %101 in 1 : vector<16x8xf32>, vector<16x1xf32> -> vector<16x9xf32>
    %103 = tpu.concatenate %95, %3 in 1 : vector<16x8xf32>, vector<16x1xf32> -> vector<16x9xf32>
    %c0_39 = arith.constant 0 : index
    %c0_40 = arith.constant 0 : index
    %104 = vector.load %arg9[%c0_39, %c0_40] : memref<16x9xf32, #tpu.memory_space<vmem>>, vector<16x9xf32>
    tpu.vector_store %arg9[%c0_39, %c0_40], %103 {strides = array<i32>} : memref<16x9xf32, #tpu.memory_space<vmem>>, vector<16x9xf32>,
    %c1 = arith.constant 1 : index
    %c0_41 = arith.constant 0 : index
    %c0_42 = arith.constant 0 : index
    %105 = vector.load %arg2[%c1, %c0_41, %c0_42] : memref<3x8x8xf32, #tpu.memory_space<vmem>>, vector<1x8x8xf32>
    %106 = vector.shape_cast %105 : vector<1x8x8xf32> to vector<8x8xf32>
    %cst_43 = arith.constant dense<0.000000e+00> : vector<16x8xf32>
    %107 = tpu.matmul %95, %106, %cst_43 {dimension_numbers = #tpu.dot_dimension_numbers<[1], [0], [0], [1], [0, 0, 1, 1], [], []>} : vector<16x8xf32>, vector<8x8xf32>, vector<16x8xf32> -> vector<16x8xf32>
    %c1_44 = arith.constant 1 : index
    %c0_45 = arith.constant 0 : index
    %c0_46 = arith.constant 0 : index
    %108 = vector.load %arg3[%c1_44, %c0_45, %c0_46] : memref<3x8x8xf32, #tpu.memory_space<vmem>>, vector<1x8x8xf32>
    %109 = vector.shape_cast %108 : vector<1x8x8xf32> to vector<8x8xf32>
    %cst_47 = arith.constant dense<0.000000e+00> : vector<16x8xf32>
    %110 = tpu.matmul %95, %109, %cst_47 {dimension_numbers = #tpu.dot_dimension_numbers<[1], [0], [0], [1], [0, 0, 1, 1], [], []>} : vector<16x8xf32>, vector<8x8xf32>, vector<16x8xf32> -> vector<16x8xf32>
    %c1_48 = arith.constant 1 : index
    %c0_49 = arith.constant 0 : index
    %111 = vector.load %arg4[%c1_48, %c0_49] : memref<3x8xf32, #tpu.memory_space<vmem>>, vector<1x8xf32>
    %112 = vector.shape_cast %111 : vector<1x8xf32> to vector<8xf32>
    %113 = vector.shape_cast %112 : vector<8xf32> to vector<1x8xf32>
    %114 = vector.broadcast %113 : vector<1x8xf32> to vector<16x8xf32>
    %115 = arith.addf %110, %114 : vector<16x8xf32>
    %c2147483647_i32_50 = arith.constant 2147483647 : i32
    %c-16_i32_51 = arith.constant -16 : i32
    %c-2147483648_i32_52 = arith.constant -2147483648 : i32
    %c0_i32_53 = arith.constant 0 : i32
    %c16_i32_54 = arith.constant 16 : i32
    %116 = arith.muli %c0_i32_53, %c16_i32_54 : i32
    %117 = tpu.assume_multiple %116, 16 : i32
    %118 = arith.index_cast %117 : i32 to index
    %c0_55 = arith.constant 0 : index
    %119 = vector.load %arg9[%118, %c0_55] : memref<16x9xf32, #tpu.memory_space<vmem>>, vector<16x9xf32>
    %cst_56 = arith.constant dense<0.000000e+00> : vector<16x16xf32>
    %120 = tpu.matmul %119, %102, %cst_56 {dimension_numbers = #tpu.dot_dimension_numbers<[1], [1], [0], [0], [0, 0, 1, 0], [], []>} : vector<16x9xf32>, vector<16x9xf32>, vector<16x16xf32> -> vector<16x16xf32>
    %121 = tpu.bitcast %120 : vector<16x16xf32> -> vector<16x16xi32>
    %c0_i32_57 = arith.constant 0 : i32
    %122 = vector.broadcast %c0_i32_57 : i32 to vector<16x16xi32>
    %123 = arith.cmpi sge, %121, %122 : vector<16x16xi32>
    %124 = vector.broadcast %c2147483647_i32_50 : i32 to vector<16x16xi32>
    %125 = arith.xori %121, %124 : vector<16x16xi32>
    %126 = arith.select %123, %121, %125 : vector<16x16xi1>, vector<16x16xi32>
    %127 = vector.broadcast %c-16_i32_51 : i32 to vector<16x16xi32>
    %128 = arith.andi %126, %127 : vector<16x16xi32>
    %129 = arith.ori %128, %2 : vector<16x16xi32>
    %cst_58 = arith.constant dense<-2147483648> : vector<16xi32>
    %130 = vector.multi_reduction <maxsi>, %129, %cst_58 [1] : vector<16x16xi32> to vector<16xi32>
    %131 = vector.shape_cast %130 : vector<16xi32> to vector<16x1xi32>
    %132 = vector.broadcast %131 : vector<16x1xi32> to vector<16x16xi32>
    %133 = arith.cmpi eq, %129, %132 : vector<16x16xi32>
    %134 = arith.extui %133 : vector<16x16xi1> to vector<16x16xi32>
    %135 = arith.sitofp %134 : vector<16x16xi32> to vector<16x16xf32>
    %136 = vector.broadcast %c-2147483648_i32_52 : i32 to vector<16x16xi32>
    %137 = arith.select %133, %136, %129 : vector<16x16xi1>, vector<16x16xi32>
    %cst_59 = arith.constant dense<-2147483648> : vector<16xi32>
    %138 = vector.multi_reduction <maxsi>, %137, %cst_59 [1] : vector<16x16xi32> to vector<16xi32>
    %139 = vector.shape_cast %138 : vector<16xi32> to vector<16x1xi32>
    %140 = vector.broadcast %139 : vector<16x1xi32> to vector<16x16xi32>
    %141 = arith.cmpi eq, %137, %140 : vector<16x16xi32>
    %142 = arith.extui %141 : vector<16x16xi1> to vector<16x16xi32>
    %143 = arith.sitofp %142 : vector<16x16xi32> to vector<16x16xf32>
    %144 = vector.broadcast %c-2147483648_i32_52 : i32 to vector<16x16xi32>
    %145 = arith.select %141, %144, %137 : vector<16x16xi1>, vector<16x16xi32>
    %cst_60 = arith.constant dense<-2147483648> : vector<16xi32>
    %146 = vector.multi_reduction <maxsi>, %145, %cst_60 [1] : vector<16x16xi32> to vector<16xi32>
    %147 = vector.shape_cast %146 : vector<16xi32> to vector<16x1xi32>
    %148 = vector.broadcast %147 : vector<16x1xi32> to vector<16x16xi32>
    %149 = arith.cmpi eq, %145, %148 : vector<16x16xi32>
    %150 = arith.extui %149 : vector<16x16xi1> to vector<16x16xi32>
    %151 = arith.sitofp %150 : vector<16x16xi32> to vector<16x16xf32>
    %152 = vector.broadcast %c-2147483648_i32_52 : i32 to vector<16x16xi32>
    %153 = arith.select %149, %152, %145 : vector<16x16xi1>, vector<16x16xi32>
    %cst_61 = arith.constant dense<-2147483648> : vector<16xi32>
    %154 = vector.multi_reduction <maxsi>, %153, %cst_61 [1] : vector<16x16xi32> to vector<16xi32>
    %155 = vector.shape_cast %154 : vector<16xi32> to vector<16x1xi32>
    %156 = vector.broadcast %155 : vector<16x1xi32> to vector<16x16xi32>
    %157 = arith.cmpi eq, %153, %156 : vector<16x16xi32>
    %158 = arith.extui %157 : vector<16x16xi1> to vector<16x16xi32>
    %159 = arith.sitofp %158 : vector<16x16xi32> to vector<16x16xf32>
    %160 = tpu.concatenate %135, %143, %151, %159 in 0 : vector<16x16xf32>, vector<16x16xf32>, vector<16x16xf32>, vector<16x16xf32> -> vector<64x16xf32>
    %cst_62 = arith.constant dense<0.000000e+00> : vector<64x8xf32>
    %161 = tpu.matmul %160, %107, %cst_62 {dimension_numbers = #tpu.dot_dimension_numbers<[1], [0], [0], [1], [0, 0, 1, 1], [], []>} : vector<64x16xf32>, vector<16x8xf32>, vector<64x8xf32> -> vector<64x8xf32>
    %162 = vector.extract_strided_slice %161 {offsets = [0, 0], sizes = [16, 8], strides = [1, 1]} : vector<64x8xf32> to vector<16x8xf32>
    %163 = vector.extract_strided_slice %161 {offsets = [16, 0], sizes = [16, 8], strides = [1, 1]} : vector<64x8xf32> to vector<16x8xf32>
    %164 = arith.maximumf %162, %163 : vector<16x8xf32>
    %165 = vector.extract_strided_slice %161 {offsets = [32, 0], sizes = [16, 8], strides = [1, 1]} : vector<64x8xf32> to vector<16x8xf32>
    %166 = arith.maximumf %164, %165 : vector<16x8xf32>
    %167 = vector.extract_strided_slice %161 {offsets = [48, 0], sizes = [16, 8], strides = [1, 1]} : vector<64x8xf32> to vector<16x8xf32>
    %168 = arith.maximumf %166, %167 : vector<16x8xf32>
    %c1_63 = arith.constant 1 : index
    %169 = arith.index_cast %117 : i32 to index
    %c0_64 = arith.constant 0 : index
    %170 = vector.load %arg8[%c1_63, %169, %c0_64] : memref<3x16x8xf32, #tpu.memory_space<vmem>>, vector<1x16x8xf32>
    %171 = vector.shape_cast %170 : vector<1x16x8xf32> to vector<16x8xf32>
    %172 = vector.shape_cast %168 : vector<16x8xf32> to vector<1x16x8xf32>
    tpu.vector_store %arg8[%c1_63, %169, %c0_64], %172 {strides = array<i32>} : memref<3x16x8xf32, #tpu.memory_space<vmem>>, vector<1x16x8xf32>,
    %c1_i32_65 = arith.constant 1 : i32
    %c1_66 = arith.constant 1 : index
    %c0_67 = arith.constant 0 : index
    %c0_68 = arith.constant 0 : index
    %173 = vector.load %arg8[%c1_66, %c0_67, %c0_68] : memref<3x16x8xf32, #tpu.memory_space<vmem>>, vector<1x16x8xf32>
    %174 = vector.shape_cast %173 : vector<1x16x8xf32> to vector<16x8xf32>
    %175 = arith.addf %174, %115 : vector<16x8xf32>
    %cst_69 = arith.constant 0.000000e+00 : f32
    %176 = vector.broadcast %cst_69 : f32 to vector<16x8xf32>
    %177 = arith.cmpf oge, %175, %176 : vector<16x8xf32>
    %cst_70 = arith.constant 2.000000e-01 : f32
    %178 = vector.broadcast %cst_70 : f32 to vector<16x8xf32>
    %179 = arith.mulf %178, %175 : vector<16x8xf32>
    %180 = arith.select %177, %175, %179 : vector<16x8xi1>, vector<16x8xf32>
    %c1_71 = arith.constant 1 : index
    %c0_72 = arith.constant 0 : index
    %c0_73 = arith.constant 0 : index
    %181 = vector.load %arg8[%c1_71, %c0_72, %c0_73] : memref<3x16x8xf32, #tpu.memory_space<vmem>>, vector<1x16x8xf32>
    %182 = vector.shape_cast %181 : vector<1x16x8xf32> to vector<16x8xf32>
    %183 = vector.shape_cast %180 : vector<16x8xf32> to vector<1x16x8xf32>
    tpu.vector_store %arg8[%c1_71, %c0_72, %c0_73], %183 {strides = array<i32>} : memref<3x16x8xf32, #tpu.memory_space<vmem>>, vector<1x16x8xf32>,
    %c1_74 = arith.constant 1 : index
    %c0_75 = arith.constant 0 : index
    %c0_76 = arith.constant 0 : index
    %184 = vector.load %arg8[%c1_74, %c0_75, %c0_76] : memref<3x16x8xf32, #tpu.memory_space<vmem>>, vector<1x16x8xf32>
    %185 = vector.shape_cast %184 : vector<1x16x8xf32> to vector<16x8xf32>
    %186 = arith.mulf %185, %185 : vector<16x8xf32>
    %cst_77 = arith.constant dense<0.000000e+00> : vector<16xf32>
    %187 = vector.multi_reduction <add>, %186, %cst_77 [1] : vector<16x8xf32> to vector<16xf32>
    %188 = vector.shape_cast %187 : vector<16xf32> to vector<16x1xf32>
    %189 = arith.addf %185, %185 : vector<16x8xf32>
    %cst_78 = arith.constant 0.000000e+00 : f32
    %190 = vector.broadcast %cst_78 : f32 to vector<16x1xf32>
    %191 = arith.subf %190, %188 : vector<16x1xf32>
    %192 = tpu.concatenate %189, %191 in 1 : vector<16x8xf32>, vector<16x1xf32> -> vector<16x9xf32>
    %193 = tpu.concatenate %185, %3 in 1 : vector<16x8xf32>, vector<16x1xf32> -> vector<16x9xf32>
    %c0_79 = arith.constant 0 : index
    %c0_80 = arith.constant 0 : index
    %194 = vector.load %arg9[%c0_79, %c0_80] : memref<16x9xf32, #tpu.memory_space<vmem>>, vector<16x9xf32>
    tpu.vector_store %arg9[%c0_79, %c0_80], %193 {strides = array<i32>} : memref<16x9xf32, #tpu.memory_space<vmem>>, vector<16x9xf32>,
    %c2 = arith.constant 2 : index
    %c0_81 = arith.constant 0 : index
    %c0_82 = arith.constant 0 : index
    %195 = vector.load %arg2[%c2, %c0_81, %c0_82] : memref<3x8x8xf32, #tpu.memory_space<vmem>>, vector<1x8x8xf32>
    %196 = vector.shape_cast %195 : vector<1x8x8xf32> to vector<8x8xf32>
    %cst_83 = arith.constant dense<0.000000e+00> : vector<16x8xf32>
    %197 = tpu.matmul %185, %196, %cst_83 {dimension_numbers = #tpu.dot_dimension_numbers<[1], [0], [0], [1], [0, 0, 1, 1], [], []>} : vector<16x8xf32>, vector<8x8xf32>, vector<16x8xf32> -> vector<16x8xf32>
    %c2_84 = arith.constant 2 : index
    %c0_85 = arith.constant 0 : index
    %c0_86 = arith.constant 0 : index
    %198 = vector.load %arg3[%c2_84, %c0_85, %c0_86] : memref<3x8x8xf32, #tpu.memory_space<vmem>>, vector<1x8x8xf32>
    %199 = vector.shape_cast %198 : vector<1x8x8xf32> to vector<8x8xf32>
    %cst_87 = arith.constant dense<0.000000e+00> : vector<16x8xf32>
    %200 = tpu.matmul %185, %199, %cst_87 {dimension_numbers = #tpu.dot_dimension_numbers<[1], [0], [0], [1], [0, 0, 1, 1], [], []>} : vector<16x8xf32>, vector<8x8xf32>, vector<16x8xf32> -> vector<16x8xf32>
    %c2_88 = arith.constant 2 : index
    %c0_89 = arith.constant 0 : index
    %201 = vector.load %arg4[%c2_88, %c0_89] : memref<3x8xf32, #tpu.memory_space<vmem>>, vector<1x8xf32>
    %202 = vector.shape_cast %201 : vector<1x8xf32> to vector<8xf32>
    %203 = vector.shape_cast %202 : vector<8xf32> to vector<1x8xf32>
    %204 = vector.broadcast %203 : vector<1x8xf32> to vector<16x8xf32>
    %205 = arith.addf %200, %204 : vector<16x8xf32>
    %c2147483647_i32_90 = arith.constant 2147483647 : i32
    %c-16_i32_91 = arith.constant -16 : i32
    %c-2147483648_i32_92 = arith.constant -2147483648 : i32
    %c0_i32_93 = arith.constant 0 : i32
    %c16_i32_94 = arith.constant 16 : i32
    %206 = arith.muli %c0_i32_93, %c16_i32_94 : i32
    %207 = tpu.assume_multiple %206, 16 : i32
    %208 = arith.index_cast %207 : i32 to index
    %c0_95 = arith.constant 0 : index
    %209 = vector.load %arg9[%208, %c0_95] : memref<16x9xf32, #tpu.memory_space<vmem>>, vector<16x9xf32>
    %cst_96 = arith.constant dense<0.000000e+00> : vector<16x16xf32>
    %210 = tpu.matmul %209, %192, %cst_96 {dimension_numbers = #tpu.dot_dimension_numbers<[1], [1], [0], [0], [0, 0, 1, 0], [], []>} : vector<16x9xf32>, vector<16x9xf32>, vector<16x16xf32> -> vector<16x16xf32>
    %211 = tpu.bitcast %210 : vector<16x16xf32> -> vector<16x16xi32>
    %c0_i32_97 = arith.constant 0 : i32
    %212 = vector.broadcast %c0_i32_97 : i32 to vector<16x16xi32>
    %213 = arith.cmpi sge, %211, %212 : vector<16x16xi32>
    %214 = vector.broadcast %c2147483647_i32_90 : i32 to vector<16x16xi32>
    %215 = arith.xori %211, %214 : vector<16x16xi32>
    %216 = arith.select %213, %211, %215 : vector<16x16xi1>, vector<16x16xi32>
    %217 = vector.broadcast %c-16_i32_91 : i32 to vector<16x16xi32>
    %218 = arith.andi %216, %217 : vector<16x16xi32>
    %219 = arith.ori %218, %2 : vector<16x16xi32>
    %cst_98 = arith.constant dense<-2147483648> : vector<16xi32>
    %220 = vector.multi_reduction <maxsi>, %219, %cst_98 [1] : vector<16x16xi32> to vector<16xi32>
    %221 = vector.shape_cast %220 : vector<16xi32> to vector<16x1xi32>
    %222 = vector.broadcast %221 : vector<16x1xi32> to vector<16x16xi32>
    %223 = arith.cmpi eq, %219, %222 : vector<16x16xi32>
    %224 = arith.extui %223 : vector<16x16xi1> to vector<16x16xi32>
    %225 = arith.sitofp %224 : vector<16x16xi32> to vector<16x16xf32>
    %226 = vector.broadcast %c-2147483648_i32_92 : i32 to vector<16x16xi32>
    %227 = arith.select %223, %226, %219 : vector<16x16xi1>, vector<16x16xi32>
    %cst_99 = arith.constant dense<-2147483648> : vector<16xi32>
    %228 = vector.multi_reduction <maxsi>, %227, %cst_99 [1] : vector<16x16xi32> to vector<16xi32>
    %229 = vector.shape_cast %228 : vector<16xi32> to vector<16x1xi32>
    %230 = vector.broadcast %229 : vector<16x1xi32> to vector<16x16xi32>
    %231 = arith.cmpi eq, %227, %230 : vector<16x16xi32>
    %232 = arith.extui %231 : vector<16x16xi1> to vector<16x16xi32>
    %233 = arith.sitofp %232 : vector<16x16xi32> to vector<16x16xf32>
    %234 = vector.broadcast %c-2147483648_i32_92 : i32 to vector<16x16xi32>
    %235 = arith.select %231, %234, %227 : vector<16x16xi1>, vector<16x16xi32>
    %cst_100 = arith.constant dense<-2147483648> : vector<16xi32>
    %236 = vector.multi_reduction <maxsi>, %235, %cst_100 [1] : vector<16x16xi32> to vector<16xi32>
    %237 = vector.shape_cast %236 : vector<16xi32> to vector<16x1xi32>
    %238 = vector.broadcast %237 : vector<16x1xi32> to vector<16x16xi32>
    %239 = arith.cmpi eq, %235, %238 : vector<16x16xi32>
    %240 = arith.extui %239 : vector<16x16xi1> to vector<16x16xi32>
    %241 = arith.sitofp %240 : vector<16x16xi32> to vector<16x16xf32>
    %242 = vector.broadcast %c-2147483648_i32_92 : i32 to vector<16x16xi32>
    %243 = arith.select %239, %242, %235 : vector<16x16xi1>, vector<16x16xi32>
    %cst_101 = arith.constant dense<-2147483648> : vector<16xi32>
    %244 = vector.multi_reduction <maxsi>, %243, %cst_101 [1] : vector<16x16xi32> to vector<16xi32>
    %245 = vector.shape_cast %244 : vector<16xi32> to vector<16x1xi32>
    %246 = vector.broadcast %245 : vector<16x1xi32> to vector<16x16xi32>
    %247 = arith.cmpi eq, %243, %246 : vector<16x16xi32>
    %248 = arith.extui %247 : vector<16x16xi1> to vector<16x16xi32>
    %249 = arith.sitofp %248 : vector<16x16xi32> to vector<16x16xf32>
    %250 = tpu.concatenate %225, %233, %241, %249 in 0 : vector<16x16xf32>, vector<16x16xf32>, vector<16x16xf32>, vector<16x16xf32> -> vector<64x16xf32>
    %cst_102 = arith.constant dense<0.000000e+00> : vector<64x8xf32>
    %251 = tpu.matmul %250, %197, %cst_102 {dimension_numbers = #tpu.dot_dimension_numbers<[1], [0], [0], [1], [0, 0, 1, 1], [], []>} : vector<64x16xf32>, vector<16x8xf32>, vector<64x8xf32> -> vector<64x8xf32>
    %252 = vector.extract_strided_slice %251 {offsets = [0, 0], sizes = [16, 8], strides = [1, 1]} : vector<64x8xf32> to vector<16x8xf32>
    %253 = vector.extract_strided_slice %251 {offsets = [16, 0], sizes = [16, 8], strides = [1, 1]} : vector<64x8xf32> to vector<16x8xf32>
    %254 = arith.maximumf %252, %253 : vector<16x8xf32>
    %255 = vector.extract_strided_slice %251 {offsets = [32, 0], sizes = [16, 8], strides = [1, 1]} : vector<64x8xf32> to vector<16x8xf32>
    %256 = arith.maximumf %254, %255 : vector<16x8xf32>
    %257 = vector.extract_strided_slice %251 {offsets = [48, 0], sizes = [16, 8], strides = [1, 1]} : vector<64x8xf32> to vector<16x8xf32>
    %258 = arith.maximumf %256, %257 : vector<16x8xf32>
    %c2_103 = arith.constant 2 : index
    %259 = arith.index_cast %207 : i32 to index
    %c0_104 = arith.constant 0 : index
    %260 = vector.load %arg8[%c2_103, %259, %c0_104] : memref<3x16x8xf32, #tpu.memory_space<vmem>>, vector<1x16x8xf32>
    %261 = vector.shape_cast %260 : vector<1x16x8xf32> to vector<16x8xf32>
    %262 = vector.shape_cast %258 : vector<16x8xf32> to vector<1x16x8xf32>
    tpu.vector_store %arg8[%c2_103, %259, %c0_104], %262 {strides = array<i32>} : memref<3x16x8xf32, #tpu.memory_space<vmem>>, vector<1x16x8xf32>,
    %c1_i32_105 = arith.constant 1 : i32
    %c2_106 = arith.constant 2 : index
    %c0_107 = arith.constant 0 : index
    %c0_108 = arith.constant 0 : index
    %263 = vector.load %arg8[%c2_106, %c0_107, %c0_108] : memref<3x16x8xf32, #tpu.memory_space<vmem>>, vector<1x16x8xf32>
    %264 = vector.shape_cast %263 : vector<1x16x8xf32> to vector<16x8xf32>
    %265 = arith.addf %264, %205 : vector<16x8xf32>
    %cst_109 = arith.constant 0.000000e+00 : f32
    %266 = vector.broadcast %cst_109 : f32 to vector<16x8xf32>
    %267 = arith.cmpf oge, %265, %266 : vector<16x8xf32>
    %cst_110 = arith.constant 2.000000e-01 : f32
    %268 = vector.broadcast %cst_110 : f32 to vector<16x8xf32>
    %269 = arith.mulf %268, %265 : vector<16x8xf32>
    %270 = arith.select %267, %265, %269 : vector<16x8xi1>, vector<16x8xf32>
    %c2_111 = arith.constant 2 : index
    %c0_112 = arith.constant 0 : index
    %c0_113 = arith.constant 0 : index
    %271 = vector.load %arg8[%c2_111, %c0_112, %c0_113] : memref<3x16x8xf32, #tpu.memory_space<vmem>>, vector<1x16x8xf32>
    %272 = vector.shape_cast %271 : vector<1x16x8xf32> to vector<16x8xf32>
    %273 = vector.shape_cast %270 : vector<16x8xf32> to vector<1x16x8xf32>
    tpu.vector_store %arg8[%c2_111, %c0_112, %c0_113], %273 {strides = array<i32>} : memref<3x16x8xf32, #tpu.memory_space<vmem>>, vector<1x16x8xf32>,
    %c0_114 = arith.constant 0 : index
    %c0_115 = arith.constant 0 : index
    %274 = vector.load %arg5[%c0_114, %c0_115] : memref<24x16xf32, #tpu.memory_space<vmem>>, vector<24x16xf32>
    %c0_116 = arith.constant 0 : index
    %c0_117 = arith.constant 0 : index
    %275 = vector.load %arg6[%c0_116, %c0_117] : memref<1x16xf32, #tpu.memory_space<vmem>>, vector<1x16xf32>
    %276 = vector.shape_cast %275 : vector<1x16xf32> to vector<16xf32>
    %277 = vector.shape_cast %276 : vector<16xf32> to vector<1x16xf32>
    %cst_118 = arith.constant 0xFF800000 : f32
    %278 = vector.broadcast %cst_118 : f32 to vector<1x16xf32>
    %c0_i32_119 = arith.constant 0 : i32
    %c16_i32_120 = arith.constant 16 : i32
    %279 = arith.muli %c0_i32_119, %c16_i32_120 : i32
    %280 = tpu.assume_multiple %279, 16 : i32
    %c0_121 = arith.constant 0 : index
    %281 = arith.index_cast %280 : i32 to index
    %c0_122 = arith.constant 0 : index
    %282 = vector.load %arg8[%c0_121, %281, %c0_122] : memref<3x16x8xf32, #tpu.memory_space<vmem>>, vector<1x16x8xf32>
    %283 = vector.shape_cast %282 : vector<1x16x8xf32> to vector<16x8xf32>
    %c1_123 = arith.constant 1 : index
    %284 = arith.index_cast %280 : i32 to index
    %c0_124 = arith.constant 0 : index
    %285 = vector.load %arg8[%c1_123, %284, %c0_124] : memref<3x16x8xf32, #tpu.memory_space<vmem>>, vector<1x16x8xf32>
    %286 = vector.shape_cast %285 : vector<1x16x8xf32> to vector<16x8xf32>
    %c2_125 = arith.constant 2 : index
    %287 = arith.index_cast %280 : i32 to index
    %c0_126 = arith.constant 0 : index
    %288 = vector.load %arg8[%c2_125, %287, %c0_126] : memref<3x16x8xf32, #tpu.memory_space<vmem>>, vector<1x16x8xf32>
    %289 = vector.shape_cast %288 : vector<1x16x8xf32> to vector<16x8xf32>
    %290 = tpu.concatenate %283, %286, %289 in 1 : vector<16x8xf32>, vector<16x8xf32>, vector<16x8xf32> -> vector<16x24xf32>
    %cst_127 = arith.constant dense<0.000000e+00> : vector<16x16xf32>
    %291 = tpu.matmul %290, %274, %cst_127 {dimension_numbers = #tpu.dot_dimension_numbers<[1], [0], [0], [1], [0, 0, 1, 1], [], []>} : vector<16x24xf32>, vector<24x16xf32>, vector<16x16xf32> -> vector<16x16xf32>
    %292 = vector.broadcast %277 : vector<1x16xf32> to vector<16x16xf32>
    %293 = arith.addf %291, %292 : vector<16x16xf32>
    %cst_128 = arith.constant 0.000000e+00 : f32
    %294 = vector.broadcast %cst_128 : f32 to vector<16x16xf32>
    %295 = arith.cmpf oge, %293, %294 : vector<16x16xf32>
    %cst_129 = arith.constant 2.000000e-01 : f32
    %296 = vector.broadcast %cst_129 : f32 to vector<16x16xf32>
    %297 = arith.mulf %296, %293 : vector<16x16xf32>
    %298 = arith.select %295, %293, %297 : vector<16x16xi1>, vector<16x16xf32>
    %cst_130 = arith.constant dense<0xFF800000> : vector<16xf32>
    %299 = vector.multi_reduction <maximumf>, %298, %cst_130 [0] : vector<16x16xf32> to vector<16xf32>
    %300 = vector.shape_cast %299 : vector<16xf32> to vector<1x16xf32>
    %301 = arith.maximumf %278, %300 : vector<1x16xf32>
    %c1_i32_131 = arith.constant 1 : i32
    %302 = vector.shape_cast %301 : vector<1x16xf32> to vector<1x1x16xf32>
    %c0_132 = arith.constant 0 : index
    %c0_133 = arith.constant 0 : index
    %c0_134 = arith.constant 0 : index
    %303 = vector.load %arg7[%c0_132, %c0_133, %c0_134] : memref<1x1x16xf32, #tpu.memory_space<vmem>>, vector<1x1x16xf32>
    tpu.vector_store %arg7[%c0_132, %c0_133, %c0_134], %302 {strides = array<i32>} : memref<1x1x16xf32, #tpu.memory_space<vmem>>, vector<1x1x16xf32>,
    return
  }
  func.func @transform_0(%arg0: i32) -> (i32, i32, i32) {
    %c0_i32 = arith.constant 0 : i32
    %c0_i32_0 = arith.constant 0 : i32
    %c0_i32_1 = arith.constant 0 : i32
    return %arg0, %c0_i32, %c0_i32_0 : i32, i32, i32
  }
  func.func @transform_1(%arg0: i32) -> (i32, i32, i32) {
    %c0_i32 = arith.constant 0 : i32
    %c0_i32_0 = arith.constant 0 : i32
    %c0_i32_1 = arith.constant 0 : i32
    %c0_i32_2 = arith.constant 0 : i32
    return %c0_i32, %c0_i32_0, %c0_i32_1 : i32, i32, i32
  }
  func.func @transform_2(%arg0: i32) -> (i32, i32, i32) {
    %c0_i32 = arith.constant 0 : i32
    %c0_i32_0 = arith.constant 0 : i32
    %c0_i32_1 = arith.constant 0 : i32
    %c0_i32_2 = arith.constant 0 : i32
    return %c0_i32, %c0_i32_0, %c0_i32_1 : i32, i32, i32
  }
  func.func @transform_3(%arg0: i32) -> (i32, i32) {
    %c0_i32 = arith.constant 0 : i32
    %c0_i32_0 = arith.constant 0 : i32
    %c0_i32_1 = arith.constant 0 : i32
    return %c0_i32, %c0_i32_0 : i32, i32
  }
  func.func @transform_4(%arg0: i32) -> (i32, i32) {
    %c0_i32 = arith.constant 0 : i32
    %c0_i32_0 = arith.constant 0 : i32
    %c0_i32_1 = arith.constant 0 : i32
    return %c0_i32, %c0_i32_0 : i32, i32
  }
  func.func @transform_5(%arg0: i32) -> (i32, i32) {
    %c0_i32 = arith.constant 0 : i32
    %c0_i32_0 = arith.constant 0 : i32
    %c0_i32_1 = arith.constant 0 : i32
    return %c0_i32, %c0_i32_0 : i32, i32
  }
  func.func @transform_6(%arg0: i32) -> (i32, i32, i32) {
    %c0_i32 = arith.constant 0 : i32
    %c0_i32_0 = arith.constant 0 : i32
    %c0_i32_1 = arith.constant 0 : i32
    return %arg0, %c0_i32, %c0_i32_0 : i32, i32, i32
  }
}

</mosaic_0001>

<llo_original>
// kernel: _heavy_da_call.1
$region0: #{_heavy_da_call.1}
  #allocation0 [shape = 'u32[]', space=smem, size = 0x4, offset = 0x4, fixed_abs, tag = 'smem constant byte address 0x4 - core index']
  #allocation1 [shape = 'u32[144,128]{1,0:T(1,128)}', space=vmem, size = 0x12000, scoped, tag = 'internal scratch']
  #allocation2 [shape = 'f32[3,16,8]{2,1,0:T(8,128)}', space=vmem, size = 0x6000, scoped, tag = 'scratch operand']
  #allocation3 [shape = 'f32[16,9]{1,0:T(8,128)}', space=vmem, size = 0x2000, scoped, tag = 'scratch operand']
  %s0 = inlined_call_operand.vmem [shape: f32[2,16,8], index: 0, kind: input, shape index: {}]
  %s1 = inlined_call_operand.vmem [shape: f32[3,8,8], index: 1, kind: input, shape index: {}]
  %s2 = inlined_call_operand.vmem [shape: f32[3,8,8], index: 2, kind: input, shape index: {}]
  %s3 = inlined_call_operand.vmem [shape: f32[3,8], index: 3, kind: input, shape index: {}]
  %s4 = inlined_call_operand.vmem [shape: f32[24,16], index: 4, kind: input, shape index: {}]
  %s5 = inlined_call_operand.vmem [shape: f32[1,16], index: 5, kind: input, shape index: {}]
  %s6 = inlined_call_operand.hbm [shape: f32[2,1,16], index: 6, kind: output, shape index: {}]
  %s7 = sld [smem:[#allocation0]]
  $region57: #{_heavy_da_call.1} parent=0
    _
  %s9 = ssub.s32 1, %s7
  %s10 = scalar_select 0, %s9, %s7
  $region1: #{_heavy_da_call.1} parent=0
    #allocation4 [shape = 'u8[1024]{0}', space=vmem, size = 0x400, scoped, tag = 'output window, operand 0']
    #allocation5 [shape = 's32[2]{0}', space=sflag, size = 0x8, scoped, tag = 'scoped memory for _heavy_da_call.1']
    %11 = vsyncpa [#allocation5], 0
    %s12 = scalar_lea.sflag [#allocation5], 1
    %13 = vsyncpa %s12, 0
    loop: start=0, step=1, limit=4
    $region2: #{_heavy_da_call.1} parent=1 // loop_pre_header
      _
    $region3: #{_heavy_da_call.1} parent=1 // loop_header
      %s15 = sphi 0, %s19
      %p16 = scmp.ge.s32.totalorder %s15, 4
      %s25 = sphi 0, %s27
      %s28 = sphi 0, %s25
      %s29 = sphi 0, %s28
      %s45 = sphi 0, %s29
      %s49 = sphi 0, %s49
      %s51 = sphi 0, %s49
      %s52 = sphi 0, %s51
      %s66 = sphi 0, %s52
      %s70 = sphi 0, %s70
      %s72 = sphi 0, %s70
      %s73 = sphi 0, %s72
      %s87 = sphi 0, %s73
      %s91 = sphi 0, %s91
      %s93 = sphi 0, %s91
      %s94 = sphi 0, %s93
      %s108 = sphi 0, %s94
      %s112 = sphi 0, %s112
      %s114 = sphi 0, %s112
      %s115 = sphi 0, %s114
      %s129 = sphi 0, %s115
      %s133 = sphi 0, %s133
      %s135 = sphi 0, %s133
      %s136 = sphi 0, %s135
      %s150 = sphi 0, %s136
      %s156 = sphi 0, %s158
      %s159 = sphi 0, %s156
      %s160 = sphi 0, %s159
      %s176 = sphi 0, %s160
    $region4: #{_heavy_da_call.1} parent=1 // loop_header_branch
      %18 = sbr.rel (%p16) target = $region8
    $region5: #{_heavy_da_call.1} parent=1 // loop_body
      %s20 = ssub.s32 %s15, 1
      %s21 = ssub.s32 %s15, 2
      %s22 = sadd.s32 %s15, 1
      %s23 = ssub.s32 %s15, %s22
      %p24 = scmp.eq.s32.totalorder %s23, 0
      %s26 = sadd.s32 %s25, 1
      %s27 = scalar_select %p24, %s25, %s26
      %p30 = pneg %p24
      %p31 = scmp.eq.s32.totalorder %s15, 1
      %p32 = por %p30, %p31
      %p33 = scmp.ne.s32.totalorder %s25, %s28
      %p34 = scmp.eq.s32.totalorder %s15, 0
      %p35 = por %p33, %p34
      %p36 = scmp.ne.s32.totalorder %s25, %s28
      %p37 = scmp.eq.s32.totalorder %s20, 1
      %p38 = por %p36, %p37
      %p39 = scmp.ne.s32.totalorder %s28, %s29
      %p40 = scmp.eq.s32.totalorder %s20, 0
      %p41 = por %p39, %p40
      %p42 = scmp.ne.s32.totalorder %s28, %s29
      %p43 = scmp.eq.s32.totalorder %s21, 1
      %p44 = por %p42, %p43
      %p46 = scmp.ne.s32.totalorder %s29, %s45
      %p47 = scmp.eq.s32.totalorder %s21, 0
      %p48 = por %p46, %p47
      %s50 = sadd.s32 %s49, 1
      %p53 = scmp.eq.s32.totalorder %s15, 1
      %p54 = scmp.ne.s32.totalorder %s49, %s51
      %p55 = scmp.eq.s32.totalorder %s15, 0
      %p56 = por %p54, %p55
      %p57 = scmp.ne.s32.totalorder %s49, %s51
      %p58 = scmp.eq.s32.totalorder %s20, 1
      %p59 = por %p57, %p58
      %p60 = scmp.ne.s32.totalorder %s51, %s52
      %p61 = scmp.eq.s32.totalorder %s20, 0
      %p62 = por %p60, %p61
      %p63 = scmp.ne.s32.totalorder %s51, %s52
      %p64 = scmp.eq.s32.totalorder %s21, 1
      %p65 = por %p63, %p64
      %p67 = scmp.ne.s32.totalorder %s52, %s66
      %p68 = scmp.eq.s32.totalorder %s21, 0
      %p69 = por %p67, %p68
      %s71 = sadd.s32 %s70, 1
      %p74 = scmp.eq.s32.totalorder %s15, 1
      %p75 = scmp.ne.s32.totalorder %s70, %s72
      %p76 = scmp.eq.s32.totalorder %s15, 0
      %p77 = por %p75, %p76
      %p78 = scmp.ne.s32.totalorder %s70, %s72
      %p79 = scmp.eq.s32.totalorder %s20, 1
      %p80 = por %p78, %p79
      %p81 = scmp.ne.s32.totalorder %s72, %s73
      %p82 = scmp.eq.s32.totalorder %s20, 0
      %p83 = por %p81, %p82
      %p84 = scmp.ne.s32.totalorder %s72, %s73
      %p85 = scmp.eq.s32.totalorder %s21, 1
      %p86 = por %p84, %p85
      %p88 = scmp.ne.s32.totalorder %s73, %s87
      %p89 = scmp.eq.s32.totalorder %s21, 0
      %p90 = por %p88, %p89
      %s92 = sadd.s32 %s91, 1
      %p95 = scmp.eq.s32.totalorder %s15, 1
      %p96 = scmp.ne.s32.totalorder %s91, %s93
      %p97 = scmp.eq.s32.totalorder %s15, 0
      %p98 = por %p96, %p97
      %p99 = scmp.ne.s32.totalorder %s91, %s93
      %p100 = scmp.eq.s32.totalorder %s20, 1
      %p101 = por %p99, %p100
      %p102 = scmp.ne.s32.totalorder %s93, %s94
      %p103 = scmp.eq.s32.totalorder %s20, 0
      %p104 = por %p102, %p103
      %p105 = scmp.ne.s32.totalorder %s93, %s94
      %p106 = scmp.eq.s32.totalorder %s21, 1
      %p107 = por %p105, %p106
      %p109 = scmp.ne.s32.totalorder %s94, %s108
      %p110 = scmp.eq.s32.totalorder %s21, 0
      %p111 = por %p109, %p110
      %s113 = sadd.s32 %s112, 1
      %p116 = scmp.eq.s32.totalorder %s15, 1
      %p117 = scmp.ne.s32.totalorder %s112, %s114
      %p118 = scmp.eq.s32.totalorder %s15, 0
      %p119 = por %p117, %p118
      %p120 = scmp.ne.s32.totalorder %s112, %s114
      %p121 = scmp.eq.s32.totalorder %s20, 1
      %p122 = por %p120, %p121
      %p123 = scmp.ne.s32.totalorder %s114, %s115
      %p124 = scmp.eq.s32.totalorder %s20, 0
      %p125 = por %p123, %p124
      %p126 = scmp.ne.s32.totalorder %s114, %s115
      %p127 = scmp.eq.s32.totalorder %s21, 1
      %p128 = por %p126, %p127
      %p130 = scmp.ne.s32.totalorder %s115, %s129
      %p131 = scmp.eq.s32.totalorder %s21, 0
      %p132 = por %p130, %p131
      %s134 = sadd.s32 %s133, 1
      %p137 = scmp.eq.s32.totalorder %s15, 1
      %p138 = scmp.ne.s32.totalorder %s133, %s135
      %p139 = scmp.eq.s32.totalorder %s15, 0
      %p140 = por %p138, %p139
      %p141 = scmp.ne.s32.totalorder %s133, %s135
      %p142 = scmp.eq.s32.totalorder %s20, 1
      %p143 = por %p141, %p142
      %p144 = scmp.ne.s32.totalorder %s135, %s136
      %p145 = scmp.eq.s32.totalorder %s20, 0
      %p146 = por %p144, %p145
      %p147 = scmp.ne.s32.totalorder %s135, %s136
      %p148 = scmp.eq.s32.totalorder %s21, 1
      %p149 = por %p147, %p148
      %p151 = scmp.ne.s32.totalorder %s136, %s150
      %p152 = scmp.eq.s32.totalorder %s21, 0
      %p153 = por %p151, %p152
      %s154 = ssub.s32 %s15, %s22
      %p155 = scmp.eq.s32.totalorder %s154, 0
      %s157 = sadd.s32 %s156, 1
      %s158 = scalar_select %p155, %s156, %s157
      %p161 = pneg %p155
      %p162 = scmp.eq.s32.totalorder %s15, 1
      %p163 = por %p161, %p162
      %p164 = scmp.ne.s32.totalorder %s156, %s159
      %p165 = scmp.eq.s32.totalorder %s15, 0
      %p166 = por %p164, %p165
      %p167 = scmp.ne.s32.totalorder %s156, %s159
      %p168 = scmp.eq.s32.totalorder %s20, 1
      %p169 = por %p167, %p168
      %p170 = scmp.ne.s32.totalorder %s159, %s160
      %p171 = scmp.eq.s32.totalorder %s20, 0
      %p172 = por %p170, %p171
      %p173 = scmp.ne.s32.totalorder %s159, %s160
      %p174 = scmp.eq.s32.totalorder %s21, 1
      %p175 = por %p173, %p174
      %p177 = scmp.ne.s32.totalorder %s160, %s176
      %p178 = scmp.eq.s32.totalorder %s21, 0
      %p179 = por %p177, %p178
      %p180 = scmp.le.s32.totalorder 1, %s15
      %p181 = scmp.lt.s32.totalorder %s15, 3
      %p182 = pnand %p180, %p181
      %p183 = pneg %p182
      // Predicated region
      $region9: #{_heavy_da_call.1} parent=5 // pred_check
        _
      $region10: #{_heavy_da_call.1} parent=5 // pred_check_branch
        %185 = sbr.rel (%p182) target = $region12
      $region11: #{_heavy_da_call.1} parent=5 // pred_region
        %s186 = ssub.s32 %s15, 1
        // Predicated region
        $region13: #{_heavy_da_call.1} parent=11 // pred_check
          %p187 = pneg %p62
        $region14: #{_heavy_da_call.1} parent=11 // pred_check_branch
          %189 = sbr.rel (%p187) target = $region16
        $region15: #{_heavy_da_call.1} parent=11 // pred_region
          _
        $region16: #{_heavy_da_call.1} parent=11 // pred_fallthru
          _
        // Predicated region
        $region17: #{_heavy_da_call.1} parent=11 // pred_check
          %p190 = pneg %p83
        $region18: #{_heavy_da_call.1} parent=11 // pred_check_branch
          %192 = sbr.rel (%p190) target = $region20
        $region19: #{_heavy_da_call.1} parent=11 // pred_region
          _
        $region20: #{_heavy_da_call.1} parent=11 // pred_fallthru
          _
        // Predicated region
        $region21: #{_heavy_da_call.1} parent=11 // pred_check
          %p193 = pneg %p104
        $region22: #{_heavy_da_call.1} parent=11 // pred_check_branch
          %195 = sbr.rel (%p193) target = $region24
        $region23: #{_heavy_da_call.1} parent=11 // pred_region
          _
        $region24: #{_heavy_da_call.1} parent=11 // pred_fallthru
          _
        // Predicated region
        $region25: #{_heavy_da_call.1} parent=11 // pred_check
          %p196 = pneg %p125
        $region26: #{_heavy_da_call.1} parent=11 // pred_check_branch
          %198 = sbr.rel (%p196) target = $region28
        $region27: #{_heavy_da_call.1} parent=11 // pred_region
          _
        $region28: #{_heavy_da_call.1} parent=11 // pred_fallthru
          _
        // Predicated region
        $region29: #{_heavy_da_call.1} parent=11 // pred_check
          %p199 = pneg %p146
        $region30: #{_heavy_da_call.1} parent=11 // pred_check_branch
          %201 = sbr.rel (%p199) target = $region32
        $region31: #{_heavy_da_call.1} parent=11 // pred_region
          _
        $region32: #{_heavy_da_call.1} parent=11 // pred_fallthru
          _
      $region12: #{_heavy_da_call.1} parent=5 // pred_fallthru
        _
      %p202 = scmp.lt.s32.totalorder %s15, 2
      // Predicated region
      $region33: #{_heavy_da_call.1} parent=5 // pred_check
        %p203 = pneg %p202
      $region34: #{_heavy_da_call.1} parent=5 // pred_check_branch
        %205 = sbr.rel (%p203) target = $region36
      $region35: #{_heavy_da_call.1} parent=5 // pred_region
        // Predicated region
        $region37: #{_heavy_da_call.1} parent=35 // pred_check
          %p206 = pneg %p35
        $region38: #{_heavy_da_call.1} parent=35 // pred_check_branch
          %208 = sbr.rel (%p206) target = $region40
        $region39: #{_heavy_da_call.1} parent=35 // pred_region
          %p209 = scmp.lt.s32.totalorder %s15, 1
          %s210 = scalar_select %p209, %s15, 1
          %s211 = smul.addr %s210, 2
          %s212 = smul.addr %s211, 8
          %s213 = scalar_lea.vmem %s0, %s212
        $region40: #{_heavy_da_call.1} parent=35 // pred_fallthru
          _
      $region36: #{_heavy_da_call.1} parent=5 // pred_fallthru
        _
      %p214 = scmp.le.s32.totalorder 1, %s15
      %p215 = scmp.lt.s32.totalorder %s15, 3
      %p216 = pnand %p214, %p215
      %p217 = pneg %p216
      // Predicated region
      $region41: #{_heavy_da_call.1} parent=5 // pred_check
        _
      $region42: #{_heavy_da_call.1} parent=5 // pred_check_branch
        %219 = sbr.rel (%p216) target = $region44
      $region43: #{_heavy_da_call.1} parent=5 // pred_region
        %s220 = ssub.s32 %s15, 1
        %p221 = scmp.lt.s32.totalorder %s20, 1
        %s222 = scalar_select %p221, %s20, 1
        %s223 = smul.addr %s222, 2
        %s224 = smul.addr %s223, 8
        %s225 = scalar_lea.vmem %s0, %s224
        %p226 = pneg %p41
        %p227 = pneg %p38
        %p228 = pneg %p62
        %p229 = pneg %p59
        %p230 = pneg %p83
        %p231 = pneg %p80
        %p232 = pneg %p104
        %p233 = pneg %p101
        %p234 = pneg %p125
        %p235 = pneg %p122
        %p236 = pneg %p146
        %p237 = pneg %p143
        %p238 = pneg %p172
        %p239 = pneg %p169
        %s240 = sand.u32 %s159, 1
        %s241 = scalar_lea.sflag [#allocation5], %s240
        %s242 = sand.u32 %s159, 1
        %s243 = scalar_lea.vmem [#allocation4], %s242
        %p244 = scmp.lt.s32.totalorder %s20, 1
        %s245 = scalar_select %p244, %s20, 1
        %s246 = smul.addr %s245, 2
        %s247 = smul.addr %s246, 8
        %s248 = scalar_lea.vmem %s0, %s247
        %v249 = vlaneseq
        %v250 = vand.u32 %v249, 127
        %v251 = vsub.s32 15, %v250
        %v252 = vld [vmem:[%s248] sm:$0xff]
        %v253 = vld [vmem:[%s248 + $0x8] sm:$0xff]
        %v254 = vmul.f32 %v252, %v252
        %v255 = vmul.f32 %v253, %v253
        %vm256 = vcmask 64512
        %v257 = vsel %vm256, %v254, 0.0
        %258 = vadd.xlane.f32.xlu0 %v257
        %v259 = vpop.xlane.xlu0 %258
        %v260 = vsel %vm256, %v255, 0.0
        %261 = vadd.xlane.f32.xlu0 %v260
        %v262 = vpop.xlane.xlu0 %261
        %v263 = vadd.f32 %v252, %v252
        %v264 = vadd.f32 %v253, %v253
        %v265 = vsub.f32 0.0, %v259
        %v266 = vsub.f32 0.0, %v262
        %v267 = vsel %vm256, %v263, %v265
        %v268 = vsel %vm256, %v264, %v266
        %v269 = vsel %vm256, %v252, 1.0
        %v270 = vsel %vm256, %v253, 1.0
        %vm271 = vcmask 72704
        %272 = vst.msk [vmem:[#allocation3] sm:$0xff] %vm271, %v269
        %273 = vst.msk [vmem:[#allocation3 + $0x8] sm:$0xff] %vm271, %v270
        %v274 = vld [vmem:[%s1] sm:$0xff]
        %v276 = vsel %vm256, %v252, 0
        %v279 = vsel %vm256, %v253, 0
        %281 = vmatprep.subr.mxu0 0.0
        %282 = vmatpush1.msra.mxu0 %v274
        %283 = vmatprep.subr.mxu0 0.0
        %284 = vmatpush1.msra.mxu0 0.0
        %285 = vmatprep.subr.mxu0 0.0
        %286 = vmatpush1.msra.mxu0 0.0
        %287 = vmatprep.subr.mxu0 0.0
        %288 = vmatpush1.msra.mxu0 0.0
        %289 = vmatprep.subr.mxu0 0.0
        %290 = vmatpush1.msra.mxu0 0.0
        %291 = vmatprep.subr.mxu0 0.0
        %292 = vmatpush1.msra.mxu0 0.0
        %293 = vmatprep.subr.mxu0 0.0
        %294 = vmatpush1.msra.mxu0 0.0
        %295 = vmatprep.subr.mxu0 0.0
        %296 = vmatpush1.msra.mxu0 0.0
        %297 = vmatprep.subr.mxu0 0.0
        %298 = vmatpush1.msra.mxu0 0.0
        %299 = vmatprep.subr.mxu0 0.0
        %300 = vmatpush1.msra.mxu0 0.0
        %301 = vmatprep.subr.mxu0 0.0
        %302 = vmatpush1.msra.mxu0 0.0
        %303 = vmatprep.subr.mxu0 0.0
        %304 = vmatpush1.msra.mxu0 0.0
        %305 = vmatprep.subr.mxu0 0.0
        %306 = vmatpush1.msra.mxu0 0.0
        %307 = vmatprep.subr.mxu0 0.0
        %308 = vmatpush1.msra.mxu0 0.0
        %309 = vmatprep.subr.mxu0 0.0
        %310 = vmatpush1.msra.mxu0 0.0
        %311 = vmatprep.subr.mxu0 0.0
        %312 = vmatpush1.msra.mxu0 0.0
        %313 = vmatprep.subr.mxu0 0.0
        %314 = vmatpush1.msra.mxu0 0.0
        %315 = vmatprep.subr.mxu0 0.0
        %316 = vmatpush1.msra.mxu0 0.0
        %317 = vmatprep.subr.mxu0 0.0
        %318 = vmatpush1.msra.mxu0 0.0
        %319 = vmatprep.subr.mxu0 0.0
        %320 = vmatpush1.msra.mxu0 0.0
        %321 = vmatprep.subr.mxu0 0.0
        %322 = vmatpush1.msra.mxu0 0.0
        %323 = vmatprep.subr.mxu0 0.0
        %324 = vmatpush1.msra.mxu0 0.0
        %325 = vmatprep.subr.mxu0 0.0
        %326 = vmatpush1.msra.mxu0 0.0
        %327 = vmatprep.subr.mxu0 0.0
        %328 = vmatpush1.msra.mxu0 0.0
        %329 = vmatprep.subr.mxu0 0.0
        %330 = vmatpush1.msra.mxu0 0.0
        %331 = vmatprep.subr.mxu0 0.0
        %332 = vmatpush1.msra.mxu0 0.0
        %333 = vmatprep.subr.mxu0 0.0
        %334 = vmatpush1.msra.mxu0 0.0
        %335 = vmatprep.subr.mxu0 0.0
        %336 = vmatpush1.msra.mxu0 0.0
        %337 = vmatprep.subr.mxu0 0.0
        %338 = vmatpush1.msra.mxu0 0.0
        %339 = vmatprep.subr.mxu0 0.0
        %340 = vmatpush1.msra.mxu0 0.0
        %341 = vmatprep.subr.mxu0 0.0
        %342 = vmatpush1.msra.mxu0 0.0
        %343 = vmatprep.subr.mxu0 0.0
        %344 = vmatpush1.msra.mxu0 0.0
        %345 = vmatprep.mubr.f32.mxu0 0.0
        %346 = vmatmul.mubr.f32.gmra.mrb[0].mxu0 %v276
        %v347 = vpop.f32.mrb[0].mxu0
        %v348 = vadd.f32 0.0, %v347
        %v349 = vpop.f32.mrb[0].mxu0
        %350 = vmatprep.mubr.f32.mxu0 0.0
        %351 = vmatmul.mubr.f32.gmra.mrb[0].mxu0 %v279
        %v352 = vpop.f32.mrb[0].mxu0
        %v353 = vadd.f32 0.0, %v352
        %v354 = vpop.f32.mrb[0].mxu0
        %355 = vdwg.mxu0
        %v356 = vld [vmem:[%s2] sm:$0xff]
        %v357 = vld [vmem:[%s3] sm:$0x1]
        %v358 = vlaneseq
        %v359 = vshrl.u32 %v358, 7
        %v360 = vsub.s32 0, %v359
        %v361 = vrot.slane %v357, %v360
        %362 = vmatprep.subr.mxu0 0.0
        %363 = vmatpush1.msra.mxu0 %v356
        %364 = vmatprep.subr.mxu0 0.0
        %365 = vmatpush1.msra.mxu0 0.0
        %366 = vmatprep.subr.mxu0 0.0
        %367 = vmatpush1.msra.mxu0 0.0
        %368 = vmatprep.subr.mxu0 0.0
        %369 = vmatpush1.msra.mxu0 0.0
        %370 = vmatprep.subr.mxu0 0.0
        %371 = vmatpush1.msra.mxu0 0.0
        %372 = vmatprep.subr.mxu0 0.0
        %373 = vmatpush1.msra.mxu0 0.0
        %374 = vmatprep.subr.mxu0 0.0
        %375 = vmatpush1.msra.mxu0 0.0
        %376 = vmatprep.subr.mxu0 0.0
        %377 = vmatpush1.msra.mxu0 0.0
        %378 = vmatprep.subr.mxu0 0.0
        %379 = vmatpush1.msra.mxu0 0.0
        %380 = vmatprep.subr.mxu0 0.0
        %381 = vmatpush1.msra.mxu0 0.0
        %382 = vmatprep.subr.mxu0 0.0
        %383 = vmatpush1.msra.mxu0 0.0
        %384 = vmatprep.subr.mxu0 0.0
        %385 = vmatpush1.msra.mxu0 0.0
        %386 = vmatprep.subr.mxu0 0.0
        %387 = vmatpush1.msra.mxu0 0.0
        %388 = vmatprep.subr.mxu0 0.0
        %389 = vmatpush1.msra.mxu0 0.0
        %390 = vmatprep.subr.mxu0 0.0
        %391 = vmatpush1.msra.mxu0 0.0
        %392 = vmatprep.subr.mxu0 0.0
        %393 = vmatpush1.msra.mxu0 0.0
        %394 = vmatprep.subr.mxu0 0.0
        %395 = vmatpush1.msra.mxu0 0.0
        %396 = vmatprep.subr.mxu0 0.0
        %397 = vmatpush1.msra.mxu0 0.0
        %398 = vmatprep.subr.mxu0 0.0
        %399 = vmatpush1.msra.mxu0 0.0
        %400 = vmatprep.subr.mxu0 0.0
        %401 = vmatpush1.msra.mxu0 0.0
        %402 = vmatprep.subr.mxu0 0.0
        %403 = vmatpush1.msra.mxu0 0.0
        %404 = vmatprep.subr.mxu0 0.0
        %405 = vmatpush1.msra.mxu0 0.0
        %406 = vmatprep.subr.mxu0 0.0
        %407 = vmatpush1.msra.mxu0 0.0
        %408 = vmatprep.subr.mxu0 0.0
        %409 = vmatpush1.msra.mxu0 0.0
        %410 = vmatprep.subr.mxu0 0.0
        %411 = vmatpush1.msra.mxu0 0.0
        %412 = vmatprep.subr.mxu0 0.0
        %413 = vmatpush1.msra.mxu0 0.0
        %414 = vmatprep.subr.mxu0 0.0
        %415 = vmatpush1.msra.mxu0 0.0
        %416 = vmatprep.subr.mxu0 0.0
        %417 = vmatpush1.msra.mxu0 0.0
        %418 = vmatprep.subr.mxu0 0.0
        %419 = vmatpush1.msra.mxu0 0.0
        %420 = vmatprep.subr.mxu0 0.0
        %421 = vmatpush1.msra.mxu0 0.0
        %422 = vmatprep.subr.mxu0 0.0
        %423 = vmatpush1.msra.mxu0 0.0
        %424 = vmatprep.subr.mxu0 0.0
        %425 = vmatpush1.msra.mxu0 0.0
        %426 = vmatprep.mubr.f32.mxu0 0.0
        %427 = vmatmul.mubr.f32.gmra.mrb[0].mxu0 %v276
        %v428 = vpop.f32.mrb[0].mxu0
        %v429 = vadd.f32 %v361, %v428
        %v430 = vpop.f32.mrb[0].mxu0
        %431 = vmatprep.mubr.f32.mxu0 0.0
        %432 = vmatmul.mubr.f32.gmra.mrb[0].mxu0 %v279
        %v433 = vpop.f32.mrb[0].mxu0
        %v434 = vadd.f32 %v361, %v433
        %v435 = vpop.f32.mrb[0].mxu0
        %436 = vdwg.mxu0
        %v437 = vld [vmem:[#allocation3] sm:$0xff]
        %v438 = vld [vmem:[#allocation3 + $0x8] sm:$0xff]
        %v440 = vsel %vm271, %v437, 0
        %v443 = vsel %vm271, %v438, 0
        %v446 = vsel %vm271, %v267, 0
        %v449 = vsel %vm271, %v268, 0
        %451 = vmatprep.subr.mxu0 0.0
        %452 = vmatpush1.xpose.msra.mxu0 %v446
        %453 = vmatprep.subr.mxu0 0.0
        %454 = vmatpush1.xpose.msra.mxu0 %v449
        %455 = vmatprep.subr.mxu0 0.0
        %456 = vmatpush1.xpose.msra.mxu0 0.0
        %457 = vmatprep.subr.mxu0 0.0
        %458 = vmatpush1.xpose.msra.mxu0 0.0
        %459 = vmatprep.subr.mxu0 0.0
        %460 = vmatpush1.xpose.msra.mxu0 0.0
        %461 = vmatprep.subr.mxu0 0.0
        %462 = vmatpush1.xpose.msra.mxu0 0.0
        %463 = vmatprep.subr.mxu0 0.0
        %464 = vmatpush1.xpose.msra.mxu0 0.0
        %465 = vmatprep.subr.mxu0 0.0
        %466 = vmatpush1.xpose.msra.mxu0 0.0
        %467 = vmatprep.subr.mxu0 0.0
        %468 = vmatpush1.xpose.msra.mxu0 0.0
        %469 = vmatprep.subr.mxu0 0.0
        %470 = vmatpush1.xpose.msra.mxu0 0.0
        %471 = vmatprep.subr.mxu0 0.0
        %472 = vmatpush1.xpose.msra.mxu0 0.0
        %473 = vmatprep.subr.mxu0 0.0
        %474 = vmatpush1.xpose.msra.mxu0 0.0
        %475 = vmatprep.subr.mxu0 0.0
        %476 = vmatpush1.xpose.msra.mxu0 0.0
        %477 = vmatprep.subr.mxu0 0.0
        %478 = vmatpush1.xpose.msra.mxu0 0.0
        %479 = vmatprep.subr.mxu0 0.0
        %480 = vmatpush1.xpose.msra.mxu0 0.0
        %481 = vmatprep.subr.mxu0 0.0
        %482 = vmatpush1.xpose.msra.mxu0 0.0
        %483 = vmatprep.subr.mxu0 0.0
        %484 = vmatpush1.xpose.msra.mxu0 0.0
        %485 = vmatprep.subr.mxu0 0.0
        %486 = vmatpush1.xpose.msra.mxu0 0.0
        %487 = vmatprep.subr.mxu0 0.0
        %488 = vmatpush1.xpose.msra.mxu0 0.0
        %489 = vmatprep.subr.mxu0 0.0
        %490 = vmatpush1.xpose.msra.mxu0 0.0
        %491 = vmatprep.subr.mxu0 0.0
        %492 = vmatpush1.xpose.msra.mxu0 0.0
        %493 = vmatprep.subr.mxu0 0.0
        %494 = vmatpush1.xpose.msra.mxu0 0.0
        %495 = vmatprep.subr.mxu0 0.0
        %496 = vmatpush1.xpose.msra.mxu0 0.0
        %497 = vmatprep.subr.mxu0 0.0
        %498 = vmatpush1.xpose.msra.mxu0 0.0
        %499 = vmatprep.subr.mxu0 0.0
        %500 = vmatpush1.xpose.msra.mxu0 0.0
        %501 = vmatprep.subr.mxu0 0.0
        %502 = vmatpush1.xpose.msra.mxu0 0.0
        %503 = vmatprep.subr.mxu0 0.0
        %504 = vmatpush1.xpose.msra.mxu0 0.0
        %505 = vmatprep.subr.mxu0 0.0
        %506 = vmatpush1.xpose.msra.mxu0 0.0
        %507 = vmatprep.subr.mxu0 0.0
        %508 = vmatpush1.xpose.msra.mxu0 0.0
        %509 = vmatprep.subr.mxu0 0.0
        %510 = vmatpush1.xpose.msra.mxu0 0.0
        %511 = vmatprep.subr.mxu0 0.0
        %512 = vmatpush1.xpose.msra.mxu0 0.0
        %513 = vmatprep.subr.mxu0 0.0
        %514 = vmatpush1.xpose.msra.mxu0 0.0
        %515 = vmatprep.mubr.f32.mxu0 0.0
        %516 = vmatmul.mubr.f32.gmra.mrb[0].mxu0 %v440
        %v517 = vpop.f32.mrb[0].mxu0
        %v518 = vadd.f32 0.0, %v517
        %v519 = vpop.f32.mrb[0].mxu0
        %520 = vmatprep.mubr.f32.mxu0 0.0
        %521 = vmatmul.mubr.f32.gmra.mrb[0].mxu0 %v443
        %v522 = vpop.f32.mrb[0].mxu0
        %v523 = vadd.f32 0.0, %v522
        %v524 = vpop.f32.mrb[0].mxu0
        %525 = vdwg.mxu0
        %vm528 = vcmp.ge.s32.totalorder %v518, 0
        %vm529 = vcmp.ge.s32.totalorder %v523, 0
        %v530 = vxor.u32 %v518, 2147483647
        %v531 = vxor.u32 %v523, 2147483647
        %v532 = vsel %vm528, %v518, %v530
        %v533 = vsel %vm529, %v523, %v531
        %v534 = vand.u32 %v532, 4294967280
        %v535 = vand.u32 %v533, 4294967280
        %v536 = vor.u32 %v534, %v251
        %v537 = vor.u32 %v535, %v251
        %vm538 = vcmask 130048
        %v539 = vsel %vm538, %v536, 2147483648
        %v540 = vand.u32 %v539, 65535
        %v541 = vshra.s32 %v539, 16
        %v542 = vcvt.s32.f32 %v540
        %v543 = vcvt.s32.f32 %v541
        %544 = vmax.xlane.f32.xlu0 %v543
        %v545 = vpop.xlane.xlu0 %544
        %vm546 = vcmp.eq.f32.partialorder %v543, %v545
        %v547 = vsel %vm546, %v542, -inf
        %548 = vmax.xlane.f32.xlu0 %v547
        %v549 = vpop.xlane.xlu0 %548
        %v550 = vcvt.f32.s32 %v549
        %v551 = vcvt.f32.s32 %v545
        %v552 = vshll.u32 %v551, 16
        %v553 = vadd.s32 %v552, %v550
        %v554 = vsel %vm538, %v537, 2147483648
        %v555 = vand.u32 %v554, 65535
        %v556 = vshra.s32 %v554, 16
        %v557 = vcvt.s32.f32 %v555
        %v558 = vcvt.s32.f32 %v556
        %559 = vmax.xlane.f32.xlu0 %v558
        %v560 = vpop.xlane.xlu0 %559
        %vm561 = vcmp.eq.f32.partialorder %v558, %v560
        %v562 = vsel %vm561, %v557, -inf
        %563 = vmax.xlane.f32.xlu0 %v562
        %v564 = vpop.xlane.xlu0 %563
        %v565 = vcvt.f32.s32 %v564
        %v566 = vcvt.f32.s32 %v560
        %v567 = vshll.u32 %v566, 16
        %v568 = vadd.s32 %v567, %v565
        %vm569 = vcmp.eq.s32.totalorder %v536, %v553
        %vm570 = vcmp.eq.s32.totalorder %v537, %v568
        %v571 = vsel %vm569, 1, 0
        %v572 = vsel %vm570, 1, 0
        %v573 = vcvt.s32.f32 %v571
        %v574 = vcvt.s32.f32 %v572
        %v575 = vsel %vm569, 2147483648, %v536
        %v576 = vsel %vm570, 2147483648, %v537
        %v577 = vsel %vm538, %v575, 2147483648
        %v578 = vand.u32 %v577, 65535
        %v579 = vshra.s32 %v577, 16
        %v580 = vcvt.s32.f32 %v578
        %v581 = vcvt.s32.f32 %v579
        %582 = vmax.xlane.f32.xlu0 %v581
        %v583 = vpop.xlane.xlu0 %582
        %vm584 = vcmp.eq.f32.partialorder %v581, %v583
        %v585 = vsel %vm584, %v580, -inf
        %586 = vmax.xlane.f32.xlu0 %v585
        %v587 = vpop.xlane.xlu0 %586
        %v588 = vcvt.f32.s32 %v587
        %v589 = vcvt.f32.s32 %v583
        %v590 = vshll.u32 %v589, 16
        %v591 = vadd.s32 %v590, %v588
        %v592 = vsel %vm538, %v576, 2147483648
        %v593 = vand.u32 %v592, 65535
        %v594 = vshra.s32 %v592, 16
        %v595 = vcvt.s32.f32 %v593
        %v596 = vcvt.s32.f32 %v594
        %597 = vmax.xlane.f32.xlu0 %v596
        %v598 = vpop.xlane.xlu0 %597
        %vm599 = vcmp.eq.f32.partialorder %v596, %v598
        %v600 = vsel %vm599, %v595, -inf
        %601 = vmax.xlane.f32.xlu0 %v600
        %v602 = vpop.xlane.xlu0 %601
        %v603 = vcvt.f32.s32 %v602
        %v604 = vcvt.f32.s32 %v598
        %v605 = vshll.u32 %v604, 16
        %v606 = vadd.s32 %v605, %v603
        %vm607 = vcmp.eq.s32.totalorder %v575, %v591
        %vm608 = vcmp.eq.s32.totalorder %v576, %v606
        %v609 = vsel %vm607, 1, 0
        %v610 = vsel %vm608, 1, 0
        %v611 = vcvt.s32.f32 %v609
        %v612 = vcvt.s32.f32 %v610
        %v613 = vsel %vm607, 2147483648, %v575
        %v614 = vsel %vm608, 2147483648, %v576
        %v615 = vsel %vm538, %v613, 2147483648
        %v616 = vand.u32 %v615, 65535
        %v617 = vshra.s32 %v615, 16
        %v618 = vcvt.s32.f32 %v616
        %v619 = vcvt.s32.f32 %v617
        %620 = vmax.xlane.f32.xlu0 %v619
        %v621 = vpop.xlane.xlu0 %620
        %vm622 = vcmp.eq.f32.partialorder %v619, %v621
        %v623 = vsel %vm622, %v618, -inf
        %624 = vmax.xlane.f32.xlu0 %v623
        %v625 = vpop.xlane.xlu0 %624
        %v626 = vcvt.f32.s32 %v625
        %v627 = vcvt.f32.s32 %v621
        %v628 = vshll.u32 %v627, 16
        %v629 = vadd.s32 %v628, %v626
        %v630 = vsel %vm538, %v614, 2147483648
        %v631 = vand.u32 %v630, 65535
        %v632 = vshra.s32 %v630, 16
        %v633 = vcvt.s32.f32 %v631
        %v634 = vcvt.s32.f32 %v632
        %635 = vmax.xlane.f32.xlu0 %v634
        %v636 = vpop.xlane.xlu0 %635
        %vm637 = vcmp.eq.f32.partialorder %v634, %v636
        %v638 = vsel %vm637, %v633, -inf
        %639 = vmax.xlane.f32.xlu0 %v638
        %v640 = vpop.xlane.xlu0 %639
        %v641 = vcvt.f32.s32 %v640
        %v642 = vcvt.f32.s32 %v636
        %v643 = vshll.u32 %v642, 16
        %v644 = vadd.s32 %v643, %v641
        %vm645 = vcmp.eq.s32.totalorder %v613, %v629
        %vm646 = vcmp.eq.s32.totalorder %v614, %v644
        %v647 = vsel %vm645, 1, 0
        %v648 = vsel %vm646, 1, 0
        %v649 = vcvt.s32.f32 %v647
        %v650 = vcvt.s32.f32 %v648
        %v651 = vsel %vm645, 2147483648, %v613
        %v652 = vsel %vm646, 2147483648, %v614
        %v653 = vsel %vm538, %v651, 2147483648
        %v654 = vand.u32 %v653, 65535
        %v655 = vshra.s32 %v653, 16
        %v656 = vcvt.s32.f32 %v654
        %v657 = vcvt.s32.f32 %v655
        %658 = vmax.xlane.f32.xlu0 %v657
        %v659 = vpop.xlane.xlu0 %658
        %vm660 = vcmp.eq.f32.partialorder %v657, %v659
        %v661 = vsel %vm660, %v656, -inf
        %662 = vmax.xlane.f32.xlu0 %v661
        %v663 = vpop.xlane.xlu0 %662
        %v664 = vcvt.f32.s32 %v663
        %v665 = vcvt.f32.s32 %v659
        %v666 = vshll.u32 %v665, 16
        %v667 = vadd.s32 %v666, %v664
        %v668 = vsel %vm538, %v652, 2147483648
        %v669 = vand.u32 %v668, 65535
        %v670 = vshra.s32 %v668, 16
        %v671 = vcvt.s32.f32 %v669
        %v672 = vcvt.s32.f32 %v670
        %673 = vmax.xlane.f32.xlu0 %v672
        %v674 = vpop.xlane.xlu0 %673
        %vm675 = vcmp.eq.f32.partialorder %v672, %v674
        %v676 = vsel %vm675, %v671, -inf
        %677 = vmax.xlane.f32.xlu0 %v676
        %v678 = vpop.xlane.xlu0 %677
        %v679 = vcvt.f32.s32 %v678
        %v680 = vcvt.f32.s32 %v674
        %v681 = vshll.u32 %v680, 16
        %v682 = vadd.s32 %v681, %v679
        %vm683 = vcmp.eq.s32.totalorder %v651, %v667
        %vm684 = vcmp.eq.s32.totalorder %v652, %v682
        %v685 = vsel %vm683, 1, 0
        %v686 = vsel %vm684, 1, 0
        %v687 = vcvt.s32.f32 %v685
        %v688 = vcvt.s32.f32 %v686
        %v690 = vsel %vm538, %v573, 0
        %v693 = vsel %vm538, %v574, 0
        %v696 = vsel %vm538, %v611, 0
        %v699 = vsel %vm538, %v612, 0
        %v702 = vsel %vm538, %v649, 0
        %v705 = vsel %vm538, %v650, 0
        %v708 = vsel %vm538, %v687, 0
        %v711 = vsel %vm538, %v688, 0
        %713 = vmatprep.subr.mxu0 0.0
        %714 = vmatpush1.msra.mxu0 %v348
        %715 = vmatprep.subr.mxu0 0.0
        %716 = vmatpush1.msra.mxu0 %v353
        %717 = vmatprep.subr.mxu0 0.0
        %718 = vmatpush1.msra.mxu0 0.0
        %719 = vmatprep.subr.mxu0 0.0
        %720 = vmatpush1.msra.mxu0 0.0
        %721 = vmatprep.subr.mxu0 0.0
        %722 = vmatpush1.msra.mxu0 0.0
        %723 = vmatprep.subr.mxu0 0.0
        %724 = vmatpush1.msra.mxu0 0.0
        %725 = vmatprep.subr.mxu0 0.0
        %726 = vmatpush1.msra.mxu0 0.0
        %727 = vmatprep.subr.mxu0 0.0
        %728 = vmatpush1.msra.mxu0 0.0
        %729 = vmatprep.subr.mxu0 0.0
        %730 = vmatpush1.msra.mxu0 0.0
        %731 = vmatprep.subr.mxu0 0.0
        %732 = vmatpush1.msra.mxu0 0.0
        %733 = vmatprep.subr.mxu0 0.0
        %734 = vmatpush1.msra.mxu0 0.0
        %735 = vmatprep.subr.mxu0 0.0
        %736 = vmatpush1.msra.mxu0 0.0
        %737 = vmatprep.subr.mxu0 0.0
        %738 = vmatpush1.msra.mxu0 0.0
        %739 = vmatprep.subr.mxu0 0.0
        %740 = vmatpush1.msra.mxu0 0.0
        %741 = vmatprep.subr.mxu0 0.0
        %742 = vmatpush1.msra.mxu0 0.0
        %743 = vmatprep.subr.mxu0 0.0
        %744 = vmatpush1.msra.mxu0 0.0
        %745 = vmatprep.subr.mxu0 0.0
        %746 = vmatpush1.msra.mxu0 0.0
        %747 = vmatprep.subr.mxu0 0.0
        %748 = vmatpush1.msra.mxu0 0.0
        %749 = vmatprep.subr.mxu0 0.0
        %750 = vmatpush1.msra.mxu0 0.0
        %751 = vmatprep.subr.mxu0 0.0
        %752 = vmatpush1.msra.mxu0 0.0
        %753 = vmatprep.subr.mxu0 0.0
        %754 = vmatpush1.msra.mxu0 0.0
        %755 = vmatprep.subr.mxu0 0.0
        %756 = vmatpush1.msra.mxu0 0.0
        %757 = vmatprep.subr.mxu0 0.0
        %758 = vmatpush1.msra.mxu0 0.0
        %759 = vmatprep.subr.mxu0 0.0
        %760 = vmatpush1.msra.mxu0 0.0
        %761 = vmatprep.subr.mxu0 0.0
        %762 = vmatpush1.msra.mxu0 0.0
        %763 = vmatprep.subr.mxu0 0.0
        %764 = vmatpush1.msra.mxu0 0.0
        %765 = vmatprep.subr.mxu0 0.0
        %766 = vmatpush1.msra.mxu0 0.0
        %767 = vmatprep.subr.mxu0 0.0
        %768 = vmatpush1.msra.mxu0 0.0
        %769 = vmatprep.subr.mxu0 0.0
        %770 = vmatpush1.msra.mxu0 0.0
        %771 = vmatprep.subr.mxu0 0.0
        %772 = vmatpush1.msra.mxu0 0.0
        %773 = vmatprep.subr.mxu0 0.0
        %774 = vmatpush1.msra.mxu0 0.0
        %775 = vmatprep.subr.mxu0 0.0
        %776 = vmatpush1.msra.mxu0 0.0
        %777 = vmatprep.mubr.f32.mxu0 0.0
        %778 = vmatmul.mubr.f32.gmra.mrb[0].mxu0 %v690
        %v779 = vpop.f32.mrb[0].mxu0
        %v780 = vadd.f32 0.0, %v779
        %v781 = vpop.f32.mrb[0].mxu0
        %782 = vmatprep.mubr.f32.mxu0 0.0
        %783 = vmatmul.mubr.f32.gmra.mrb[0].mxu0 %v693
        %v784 = vpop.f32.mrb[0].mxu0
        %v785 = vadd.f32 0.0, %v784
        %v786 = vpop.f32.mrb[0].mxu0
        %787 = vmatprep.mubr.f32.mxu0 0.0
        %788 = vmatmul.mubr.f32.gmra.mrb[0].mxu0 %v696
        %v789 = vpop.f32.mrb[0].mxu0
        %v790 = vadd.f32 0.0, %v789
        %v791 = vpop.f32.mrb[0].mxu0
        %792 = vmatprep.mubr.f32.mxu0 0.0
        %793 = vmatmul.mubr.f32.gmra.mrb[0].mxu0 %v699
        %v794 = vpop.f32.mrb[0].mxu0
        %v795 = vadd.f32 0.0, %v794
        %v796 = vpop.f32.mrb[0].mxu0
        %797 = vmatprep.mubr.f32.mxu0 0.0
        %798 = vmatmul.mubr.f32.gmra.mrb[0].mxu0 %v702
        %v799 = vpop.f32.mrb[0].mxu0
        %v800 = vadd.f32 0.0, %v799
        %v801 = vpop.f32.mrb[0].mxu0
        %802 = vmatprep.mubr.f32.mxu0 0.0
        %803 = vmatmul.mubr.f32.gmra.mrb[0].mxu0 %v705
        %v804 = vpop.f32.mrb[0].mxu0
        %v805 = vadd.f32 0.0, %v804
        %v806 = vpop.f32.mrb[0].mxu0
        %807 = vmatprep.mubr.f32.mxu0 0.0
        %808 = vmatmul.mubr.f32.gmra.mrb[0].mxu0 %v708
        %v809 = vpop.f32.mrb[0].mxu0
        %v810 = vadd.f32 0.0, %v809
        %v811 = vpop.f32.mrb[0].mxu0
        %812 = vmatprep.mubr.f32.mxu0 0.0
        %813 = vmatmul.mubr.f32.gmra.mrb[0].mxu0 %v711
        %v814 = vpop.f32.mrb[0].mxu0
        %v815 = vadd.f32 0.0, %v814
        %v816 = vpop.f32.mrb[0].mxu0
        %817 = vdwg.mxu0
        %v818 = vmax.f32 %v780, %v790
        %v819 = vmax.f32 %v785, %v795
        %v820 = vmax.f32 %v818, %v800
        %v821 = vmax.f32 %v819, %v805
        %v822 = vmax.f32 %v820, %v810
        %v823 = vmax.f32 %v821, %v815
        %824 = vst.msk [vmem:[#allocation2] sm:$0xff] %vm256, %v822
        %825 = vst.msk [vmem:[#allocation2 + $0x8] sm:$0xff] %vm256, %v823
        %v826 = vld [vmem:[#allocation2] sm:$0xff]
        %v827 = vld [vmem:[#allocation2 + $0x8] sm:$0xff]
        %v828 = vadd.f32 %v826, %v429
        %v829 = vadd.f32 %v827, %v434
        %vm830 = vcmp.ge.f32.partialorder %v828, 0.0
        %vm831 = vcmp.ge.f32.partialorder %v829, 0.0
        %v832 = vmul.f32 %v828, 0.2
        %v833 = vmul.f32 %v829, 0.2
        %v834 = vsel %vm830, %v828, %v832
        %v835 = vsel %vm831, %v829, %v833
        %836 = vst.msk [vmem:[#allocation2] sm:$0xff] %vm256, %v834
        %837 = vst.msk [vmem:[#allocation2 + $0x8] sm:$0xff] %vm256, %v835
        %v838 = vld [vmem:[#allocation2] sm:$0xff]
        %v839 = vld [vmem:[#allocation2 + $0x8] sm:$0xff]
        %v840 = vmul.f32 %v838, %v838
        %v841 = vmul.f32 %v839, %v839
        %v842 = vsel %vm256, %v840, 0.0
        %843 = vadd.xlane.f32.xlu0 %v842
        %v844 = vpop.xlane.xlu0 %843
        %v845 = vsel %vm256, %v841, 0.0
        %846 = vadd.xlane.f32.xlu0 %v845
        %v847 = vpop.xlane.xlu0 %846
        %v848 = vadd.f32 %v838, %v838
        %v849 = vadd.f32 %v839, %v839
        %v850 = vsub.f32 0.0, %v844
        %v851 = vsub.f32 0.0, %v847
        %v852 = vsel %vm256, %v848, %v850
        %v853 = vsel %vm256, %v849, %v851
        %v854 = vsel %vm256, %v838, 1.0
        %v855 = vsel %vm256, %v839, 1.0
        %856 = vst.msk [vmem:[#allocation3] sm:$0xff] %vm271, %v854
        %857 = vst.msk [vmem:[#allocation3 + $0x8] sm:$0xff] %vm271, %v855
        %s858 = scalar_lea.vmem %s1, 8
        %v859 = vld [vmem:[%s858] sm:$0xff]
        %v861 = vsel %vm256, %v838, 0
        %v864 = vsel %vm256, %v839, 0
        %866 = vmatprep.subr.mxu0 0.0
        %867 = vmatpush1.msra.mxu0 %v859
        %868 = vmatprep.subr.mxu0 0.0
        %869 = vmatpush1.msra.mxu0 0.0
        %870 = vmatprep.subr.mxu0 0.0
        %871 = vmatpush1.msra.mxu0 0.0
        %872 = vmatprep.subr.mxu0 0.0
        %873 = vmatpush1.msra.mxu0 0.0
        %874 = vmatprep.subr.mxu0 0.0
        %875 = vmatpush1.msra.mxu0 0.0
        %876 = vmatprep.subr.mxu0 0.0
        %877 = vmatpush1.msra.mxu0 0.0
        %878 = vmatprep.subr.mxu0 0.0
        %879 = vmatpush1.msra.mxu0 0.0
        %880 = vmatprep.subr.mxu0 0.0
        %881 = vmatpush1.msra.mxu0 0.0
        %882 = vmatprep.subr.mxu0 0.0
        %883 = vmatpush1.msra.mxu0 0.0
        %884 = vmatprep.subr.mxu0 0.0
        %885 = vmatpush1.msra.mxu0 0.0
        %886 = vmatprep.subr.mxu0 0.0
        %887 = vmatpush1.msra.mxu0 0.0
        %888 = vmatprep.subr.mxu0 0.0
        %889 = vmatpush1.msra.mxu0 0.0
        %890 = vmatprep.subr.mxu0 0.0
        %891 = vmatpush1.msra.mxu0 0.0
        %892 = vmatprep.subr.mxu0 0.0
        %893 = vmatpush1.msra.mxu0 0.0
        %894 = vmatprep.subr.mxu0 0.0
        %895 = vmatpush1.msra.mxu0 0.0
        %896 = vmatprep.subr.mxu0 0.0
        %897 = vmatpush1.msra.mxu0 0.0
        %898 = vmatprep.subr.mxu0 0.0
        %899 = vmatpush1.msra.mxu0 0.0
        %900 = vmatprep.subr.mxu0 0.0
        %901 = vmatpush1.msra.mxu0 0.0
        %902 = vmatprep.subr.mxu0 0.0
        %903 = vmatpush1.msra.mxu0 0.0
        %904 = vmatprep.subr.mxu0 0.0
        %905 = vmatpush1.msra.mxu0 0.0
        %906 = vmatprep.subr.mxu0 0.0
        %907 = vmatpush1.msra.mxu0 0.0
        %908 = vmatprep.subr.mxu0 0.0
        %909 = vmatpush1.msra.mxu0 0.0
        %910 = vmatprep.subr.mxu0 0.0
        %911 = vmatpush1.msra.mxu0 0.0
        %912 = vmatprep.subr.mxu0 0.0
        %913 = vmatpush1.msra.mxu0 0.0
        %914 = vmatprep.subr.mxu0 0.0
        %915 = vmatpush1.msra.mxu0 0.0
        %916 = vmatprep.subr.mxu0 0.0
        %917 = vmatpush1.msra.mxu0 0.0
        %918 = vmatprep.subr.mxu0 0.0
        %919 = vmatpush1.msra.mxu0 0.0
        %920 = vmatprep.subr.mxu0 0.0
        %921 = vmatpush1.msra.mxu0 0.0
        %922 = vmatprep.subr.mxu0 0.0
        %923 = vmatpush1.msra.mxu0 0.0
        %924 = vmatprep.subr.mxu0 0.0
        %925 = vmatpush1.msra.mxu0 0.0
        %926 = vmatprep.subr.mxu0 0.0
        %927 = vmatpush1.msra.mxu0 0.0
        %928 = vmatprep.subr.mxu0 0.0
        %929 = vmatpush1.msra.mxu0 0.0
        %930 = vmatprep.mubr.f32.mxu0 0.0
        %931 = vmatmul.mubr.f32.gmra.mrb[0].mxu0 %v861
        %v932 = vpop.f32.mrb[0].mxu0
        %v933 = vadd.f32 0.0, %v932
        %v934 = vpop.f32.mrb[0].mxu0
        %935 = vmatprep.mubr.f32.mxu0 0.0
        %936 = vmatmul.mubr.f32.gmra.mrb[0].mxu0 %v864
        %v937 = vpop.f32.mrb[0].mxu0
        %v938 = vadd.f32 0.0, %v937
        %v939 = vpop.f32.mrb[0].mxu0
        %940 = vdwg.mxu0
        %s941 = scalar_lea.vmem %s2, 8
        %v942 = vld [vmem:[%s941] sm:$0xff]
        %v943 = vld [vmem:[%s3 + $0x1] sm:$0x1]
        %v944 = vlaneseq
        %v945 = vshrl.u32 %v944, 7
        %v946 = vsub.s32 0, %v945
        %v947 = vrot.slane %v943, %v946
        %948 = vmatprep.subr.mxu0 0.0
        %949 = vmatpush1.msra.mxu0 %v942
        %950 = vmatprep.subr.mxu0 0.0
        %951 = vmatpush1.msra.mxu0 0.0
        %952 = vmatprep.subr.mxu0 0.0
        %953 = vmatpush1.msra.mxu0 0.0
        %954 = vmatprep.subr.mxu0 0.0
        %955 = vmatpush1.msra.mxu0 0.0
        %956 = vmatprep.subr.mxu0 0.0
        %957 = vmatpush1.msra.mxu0 0.0
        %958 = vmatprep.subr.mxu0 0.0
        %959 = vmatpush1.msra.mxu0 0.0
        %960 = vmatprep.subr.mxu0 0.0
        %961 = vmatpush1.msra.mxu0 0.0
        %962 = vmatprep.subr.mxu0 0.0
        %963 = vmatpush1.msra.mxu0 0.0
        %964 = vmatprep.subr.mxu0 0.0
        %965 = vmatpush1.msra.mxu0 0.0
        %966 = vmatprep.subr.mxu0 0.0
        %967 = vmatpush1.msra.mxu0 0.0
        %968 = vmatprep.subr.mxu0 0.0
        %969 = vmatpush1.msra.mxu0 0.0
        %970 = vmatprep.subr.mxu0 0.0
        %971 = vmatpush1.msra.mxu0 0.0
        %972 = vmatprep.subr.mxu0 0.0
        %973 = vmatpush1.msra.mxu0 0.0
        %974 = vmatprep.subr.mxu0 0.0
        %975 = vmatpush1.msra.mxu0 0.0
        %976 = vmatprep.subr.mxu0 0.0
        %977 = vmatpush1.msra.mxu0 0.0
        %978 = vmatprep.subr.mxu0 0.0
        %979 = vmatpush1.msra.mxu0 0.0
        %980 = vmatprep.subr.mxu0 0.0
        %981 = vmatpush1.msra.mxu0 0.0
        %982 = vmatprep.subr.mxu0 0.0
        %983 = vmatpush1.msra.mxu0 0.0
        %984 = vmatprep.subr.mxu0 0.0
        %985 = vmatpush1.msra.mxu0 0.0
        %986 = vmatprep.subr.mxu0 0.0
        %987 = vmatpush1.msra.mxu0 0.0
        %988 = vmatprep.subr.mxu0 0.0
        %989 = vmatpush1.msra.mxu0 0.0
        %990 = vmatprep.subr.mxu0 0.0
        %991 = vmatpush1.msra.mxu0 0.0
        %992 = vmatprep.subr.mxu0 0.0
        %993 = vmatpush1.msra.mxu0 0.0
        %994 = vmatprep.subr.mxu0 0.0
        %995 = vmatpush1.msra.mxu0 0.0
        %996 = vmatprep.subr.mxu0 0.0
        %997 = vmatpush1.msra.mxu0 0.0
        %998 = vmatprep.subr.mxu0 0.0
        %999 = vmatpush1.msra.mxu0 0.0
        %1000 = vmatprep.subr.mxu0 0.0
        %1001 = vmatpush1.msra.mxu0 0.0
        %1002 = vmatprep.subr.mxu0 0.0
        %1003 = vmatpush1.msra.mxu0 0.0
        %1004 = vmatprep.subr.mxu0 0.0
        %1005 = vmatpush1.msra.mxu0 0.0
        %1006 = vmatprep.subr.mxu0 0.0
        %1007 = vmatpush1.msra.mxu0 0.0
        %1008 = vmatprep.subr.mxu0 0.0
        %1009 = vmatpush1.msra.mxu0 0.0
        %1010 = vmatprep.subr.mxu0 0.0
        %1011 = vmatpush1.msra.mxu0 0.0
        %1012 = vmatprep.mubr.f32.mxu0 0.0
        %1013 = vmatmul.mubr.f32.gmra.mrb[0].mxu0 %v861
        %v1014 = vpop.f32.mrb[0].mxu0
        %v1015 = vadd.f32 %v947, %v1014
        %v1016 = vpop.f32.mrb[0].mxu0
        %1017 = vmatprep.mubr.f32.mxu0 0.0
        %1018 = vmatmul.mubr.f32.gmra.mrb[0].mxu0 %v864
        %v1019 = vpop.f32.mrb[0].mxu0
        %v1020 = vadd.f32 %v947, %v1019
        %v1021 = vpop.f32.mrb[0].mxu0
        %1022 = vdwg.mxu0
        %v1023 = vld [vmem:[#allocation3] sm:$0xff]
        %v1024 = vld [vmem:[#allocation3 + $0x8] sm:$0xff]
        %v1026 = vsel %vm271, %v1023, 0
        %v1029 = vsel %vm271, %v1024, 0
        %v1032 = vsel %vm271, %v852, 0
        %v1035 = vsel %vm271, %v853, 0
        %1037 = vmatprep.subr.mxu0 0.0
        %1038 = vmatpush1.xpose.msra.mxu0 %v1032
        %1039 = vmatprep.subr.mxu0 0.0
        %1040 = vmatpush1.xpose.msra.mxu0 %v1035
        %1041 = vmatprep.subr.mxu0 0.0
        %1042 = vmatpush1.xpose.msra.mxu0 0.0
        %1043 = vmatprep.subr.mxu0 0.0
        %1044 = vmatpush1.xpose.msra.mxu0 0.0
        %1045 = vmatprep.subr.mxu0 0.0
        %1046 = vmatpush1.xpose.msra.mxu0 0.0
        %1047 = vmatprep.subr.mxu0 0.0
        %1048 = vmatpush1.xpose.msra.mxu0 0.0
        %1049 = vmatprep.subr.mxu0 0.0
        %1050 = vmatpush1.xpose.msra.mxu0 0.0
        %1051 = vmatprep.subr.mxu0 0.0
        %1052 = vmatpush1.xpose.msra.mxu0 0.0
        %1053 = vmatprep.subr.mxu0 0.0
        %1054 = vmatpush1.xpose.msra.mxu0 0.0
        %1055 = vmatprep.subr.mxu0 0.0
        %1056 = vmatpush1.xpose.msra.mxu0 0.0
        %1057 = vmatprep.subr.mxu0 0.0
        %1058 = vmatpush1.xpose.msra.mxu0 0.0
        %1059 = vmatprep.subr.mxu0 0.0
        %1060 = vmatpush1.xpose.msra.mxu0 0.0
        %1061 = vmatprep.subr.mxu0 0.0
        %1062 = vmatpush1.xpose.msra.mxu0 0.0
        %1063 = vmatprep.subr.mxu0 0.0
        %1064 = vmatpush1.xpose.msra.mxu0 0.0
        %1065 = vmatprep.subr.mxu0 0.0
        %1066 = vmatpush1.xpose.msra.mxu0 0.0
        %1067 = vmatprep.subr.mxu0 0.0
        %1068 = vmatpush1.xpose.msra.mxu0 0.0
        %1069 = vmatprep.subr.mxu0 0.0
        %1070 = vmatpush1.xpose.msra.mxu0 0.0
        %1071 = vmatprep.subr.mxu0 0.0
        %1072 = vmatpush1.xpose.msra.mxu0 0.0
        %1073 = vmatprep.subr.mxu0 0.0
        %1074 = vmatpush1.xpose.msra.mxu0 0.0
        %1075 = vmatprep.subr.mxu0 0.0
        %1076 = vmatpush1.xpose.msra.mxu0 0.0
        %1077 = vmatprep.subr.mxu0 0.0
        %1078 = vmatpush1.xpose.msra.mxu0 0.0
        %1079 = vmatprep.subr.mxu0 0.0
        %1080 = vmatpush1.xpose.msra.mxu0 0.0
        %1081 = vmatprep.subr.mxu0 0.0
        %1082 = vmatpush1.xpose.msra.mxu0 0.0
        %1083 = vmatprep.subr.mxu0 0.0
        %1084 = vmatpush1.xpose.msra.mxu0 0.0
        %1085 = vmatprep.subr.mxu0 0.0
        %1086 = vmatpush1.xpose.msra.mxu0 0.0
        %1087 = vmatprep.subr.mxu0 0.0
        %1088 = vmatpush1.xpose.msra.mxu0 0.0
        %1089 = vmatprep.subr.mxu0 0.0
        %1090 = vmatpush1.xpose.msra.mxu0 0.0
        %1091 = vmatprep.subr.mxu0 0.0
        %1092 = vmatpush1.xpose.msra.mxu0 0.0
        %1093 = vmatprep.subr.mxu0 0.0
        %1094 = vmatpush1.xpose.msra.mxu0 0.0
        %1095 = vmatprep.subr.mxu0 0.0
        %1096 = vmatpush1.xpose.msra.mxu0 0.0
        %1097 = vmatprep.subr.mxu0 0.0
        %1098 = vmatpush1.xpose.msra.mxu0 0.0
        %1099 = vmatprep.subr.mxu0 0.0
        %1100 = vmatpush1.xpose.msra.mxu0 0.0
        %1101 = vmatprep.mubr.f32.mxu0 0.0
        %1102 = vmatmul.mubr.f32.gmra.mrb[0].mxu0 %v1026
        %v1103 = vpop.f32.mrb[0].mxu0
        %v1104 = vadd.f32 0.0, %v1103
        %v1105 = vpop.f32.mrb[0].mxu0
        %1106 = vmatprep.mubr.f32.mxu0 0.0
        %1107 = vmatmul.mubr.f32.gmra.mrb[0].mxu0 %v1029
        %v1108 = vpop.f32.mrb[0].mxu0
        %v1109 = vadd.f32 0.0, %v1108
        %v1110 = vpop.f32.mrb[0].mxu0
        %1111 = vdwg.mxu0
        %vm1114 = vcmp.ge.s32.totalorder %v1104, 0
        %vm1115 = vcmp.ge.s32.totalorder %v1109, 0
        %v1116 = vxor.u32 %v1104, 2147483647
        %v1117 = vxor.u32 %v1109, 2147483647
        %v1118 = vsel %vm1114, %v1104, %v1116
        %v1119 = vsel %vm1115, %v1109, %v1117
        %v1120 = vand.u32 %v1118, 4294967280
        %v1121 = vand.u32 %v1119, 4294967280
        %v1122 = vor.u32 %v1120, %v251
        %v1123 = vor.u32 %v1121, %v251
        %v1124 = vsel %vm538, %v1122, 2147483648
        %v1125 = vand.u32 %v1124, 65535
        %v1126 = vshra.s32 %v1124, 16
        %v1127 = vcvt.s32.f32 %v1125
        %v1128 = vcvt.s32.f32 %v1126
        %1129 = vmax.xlane.f32.xlu0 %v1128
        %v1130 = vpop.xlane.xlu0 %1129
        %vm1131 = vcmp.eq.f32.partialorder %v1128, %v1130
        %v1132 = vsel %vm1131, %v1127, -inf
        %1133 = vmax.xlane.f32.xlu0 %v1132
        %v1134 = vpop.xlane.xlu0 %1133
        %v1135 = vcvt.f32.s32 %v1134
        %v1136 = vcvt.f32.s32 %v1130
        %v1137 = vshll.u32 %v1136, 16
        %v1138 = vadd.s32 %v1137, %v1135
        %v1139 = vsel %vm538, %v1123, 2147483648
        %v1140 = vand.u32 %v1139, 65535
        %v1141 = vshra.s32 %v1139, 16
        %v1142 = vcvt.s32.f32 %v1140
        %v1143 = vcvt.s32.f32 %v1141
        %1144 = vmax.xlane.f32.xlu0 %v1143
        %v1145 = vpop.xlane.xlu0 %1144
        %vm1146 = vcmp.eq.f32.partialorder %v1143, %v1145
        %v1147 = vsel %vm1146, %v1142, -inf
        %1148 = vmax.xlane.f32.xlu0 %v1147
        %v1149 = vpop.xlane.xlu0 %1148
        %v1150 = vcvt.f32.s32 %v1149
        %v1151 = vcvt.f32.s32 %v1145
        %v1152 = vshll.u32 %v1151, 16
        %v1153 = vadd.s32 %v1152, %v1150
        %vm1154 = vcmp.eq.s32.totalorder %v1122, %v1138
        %vm1155 = vcmp.eq.s32.totalorder %v1123, %v1153
        %v1156 = vsel %vm1154, 1, 0
        %v1157 = vsel %vm1155, 1, 0
        %v1158 = vcvt.s32.f32 %v1156
        %v1159 = vcvt.s32.f32 %v1157
        %v1160 = vsel %vm1154, 2147483648, %v1122
        %v1161 = vsel %vm1155, 2147483648, %v1123
        %v1162 = vsel %vm538, %v1160, 2147483648
        %v1163 = vand.u32 %v1162, 65535
        %v1164 = vshra.s32 %v1162, 16
        %v1165 = vcvt.s32.f32 %v1163
        %v1166 = vcvt.s32.f32 %v1164
        %1167 = vmax.xlane.f32.xlu0 %v1166
        %v1168 = vpop.xlane.xlu0 %1167
        %vm1169 = vcmp.eq.f32.partialorder %v1166, %v1168
        %v1170 = vsel %vm1169, %v1165, -inf
        %1171 = vmax.xlane.f32.xlu0 %v1170
        %v1172 = vpop.xlane.xlu0 %1171
        %v1173 = vcvt.f32.s32 %v1172
        %v1174 = vcvt.f32.s32 %v1168
        %v1175 = vshll.u32 %v1174, 16
        %v1176 = vadd.s32 %v1175, %v1173
        %v1177 = vsel %vm538, %v1161, 2147483648
        %v1178 = vand.u32 %v1177, 65535
        %v1179 = vshra.s32 %v1177, 16
        %v1180 = vcvt.s32.f32 %v1178
        %v1181 = vcvt.s32.f32 %v1179
        %1182 = vmax.xlane.f32.xlu0 %v1181
        %v1183 = vpop.xlane.xlu0 %1182
        %vm1184 = vcmp.eq.f32.partialorder %v1181, %v1183
        %v1185 = vsel %vm1184, %v1180, -inf
        %1186 = vmax.xlane.f32.xlu0 %v1185
        %v1187 = vpop.xlane.xlu0 %1186
        %v1188 = vcvt.f32.s32 %v1187
        %v1189 = vcvt.f32.s32 %v1183
        %v1190 = vshll.u32 %v1189, 16
        %v1191 = vadd.s32 %v1190, %v1188
        %vm1192 = vcmp.eq.s32.totalorder %v1160, %v1176
        %vm1193 = vcmp.eq.s32.totalorder %v1161, %v1191
        %v1194 = vsel %vm1192, 1, 0
        %v1195 = vsel %vm1193, 1, 0
        %v1196 = vcvt.s32.f32 %v1194
        %v1197 = vcvt.s32.f32 %v1195
        %v1198 = vsel %vm1192, 2147483648, %v1160
        %v1199 = vsel %vm1193, 2147483648, %v1161
        %v1200 = vsel %vm538, %v1198, 2147483648
        %v1201 = vand.u32 %v1200, 65535
        %v1202 = vshra.s32 %v1200, 16
        %v1203 = vcvt.s32.f32 %v1201
        %v1204 = vcvt.s32.f32 %v1202
        %1205 = vmax.xlane.f32.xlu0 %v1204
        %v1206 = vpop.xlane.xlu0 %1205
        %vm1207 = vcmp.eq.f32.partialorder %v1204, %v1206
        %v1208 = vsel %vm1207, %v1203, -inf
        %1209 = vmax.xlane.f32.xlu0 %v1208
        %v1210 = vpop.xlane.xlu0 %1209
        %v1211 = vcvt.f32.s32 %v1210
        %v1212 = vcvt.f32.s32 %v1206
        %v1213 = vshll.u32 %v1212, 16
        %v1214 = vadd.s32 %v1213, %v1211
        %v1215 = vsel %vm538, %v1199, 2147483648
        %v1216 = vand.u32 %v1215, 65535
        %v1217 = vshra.s32 %v1215, 16
        %v1218 = vcvt.s32.f32 %v1216
        %v1219 = vcvt.s32.f32 %v1217
        %1220 = vmax.xlane.f32.xlu0 %v1219
        %v1221 = vpop.xlane.xlu0 %1220
        %vm1222 = vcmp.eq.f32.partialorder %v1219, %v1221
        %v1223 = vsel %vm1222, %v1218, -inf
        %1224 = vmax.xlane.f32.xlu0 %v1223
        %v1225 = vpop.xlane.xlu0 %1224
        %v1226 = vcvt.f32.s32 %v1225
        %v1227 = vcvt.f32.s32 %v1221
        %v1228 = vshll.u32 %v1227, 16
        %v1229 = vadd.s32 %v1228, %v1226
        %vm1230 = vcmp.eq.s32.totalorder %v1198, %v1214
        %vm1231 = vcmp.eq.s32.totalorder %v1199, %v1229
        %v1232 = vsel %vm1230, 1, 0
        %v1233 = vsel %vm1231, 1, 0
        %v1234 = vcvt.s32.f32 %v1232
        %v1235 = vcvt.s32.f32 %v1233
        %v1236 = vsel %vm1230, 2147483648, %v1198
        %v1237 = vsel %vm1231, 2147483648, %v1199
        %v1238 = vsel %vm538, %v1236, 2147483648
        %v1239 = vand.u32 %v1238, 65535
        %v1240 = vshra.s32 %v1238, 16
        %v1241 = vcvt.s32.f32 %v1239
        %v1242 = vcvt.s32.f32 %v1240
        %1243 = vmax.xlane.f32.xlu0 %v1242
        %v1244 = vpop.xlane.xlu0 %1243
        %vm1245 = vcmp.eq.f32.partialorder %v1242, %v1244
        %v1246 = vsel %vm1245, %v1241, -inf
        %1247 = vmax.xlane.f32.xlu0 %v1246
        %v1248 = vpop.xlane.xlu0 %1247
        %v1249 = vcvt.f32.s32 %v1248
        %v1250 = vcvt.f32.s32 %v1244
        %v1251 = vshll.u32 %v1250, 16
        %v1252 = vadd.s32 %v1251, %v1249
        %v1253 = vsel %vm538, %v1237, 2147483648
        %v1254 = vand.u32 %v1253, 65535
        %v1255 = vshra.s32 %v1253, 16
        %v1256 = vcvt.s32.f32 %v1254
        %v1257 = vcvt.s32.f32 %v1255
        %1258 = vmax.xlane.f32.xlu0 %v1257
        %v1259 = vpop.xlane.xlu0 %1258
        %vm1260 = vcmp.eq.f32.partialorder %v1257, %v1259
        %v1261 = vsel %vm1260, %v1256, -inf
        %1262 = vmax.xlane.f32.xlu0 %v1261
        %v1263 = vpop.xlane.xlu0 %1262
        %v1264 = vcvt.f32.s32 %v1263
        %v1265 = vcvt.f32.s32 %v1259
        %v1266 = vshll.u32 %v1265, 16
        %v1267 = vadd.s32 %v1266, %v1264
        %vm1268 = vcmp.eq.s32.totalorder %v1236, %v1252
        %vm1269 = vcmp.eq.s32.totalorder %v1237, %v1267
        %v1270 = vsel %vm1268, 1, 0
        %v1271 = vsel %vm1269, 1, 0
        %v1272 = vcvt.s32.f32 %v1270
        %v1273 = vcvt.s32.f32 %v1271
        %v1275 = vsel %vm538, %v1158, 0
        %v1278 = vsel %vm538, %v1159, 0
        %v1281 = vsel %vm538, %v1196, 0
        %v1284 = vsel %vm538, %v1197, 0
        %v1287 = vsel %vm538, %v1234, 0
        %v1290 = vsel %vm538, %v1235, 0
        %v1293 = vsel %vm538, %v1272, 0
        %v1296 = vsel %vm538, %v1273, 0
        %1298 = vmatprep.subr.mxu0 0.0
        %1299 = vmatpush1.msra.mxu0 %v933
        %1300 = vmatprep.subr.mxu0 0.0
        %1301 = vmatpush1.msra.mxu0 %v938
        %1302 = vmatprep.subr.mxu0 0.0
        %1303 = vmatpush1.msra.mxu0 0.0
        %1304 = vmatprep.subr.mxu0 0.0
        %1305 = vmatpush1.msra.mxu0 0.0
        %1306 = vmatprep.subr.mxu0 0.0
        %1307 = vmatpush1.msra.mxu0 0.0
        %1308 = vmatprep.subr.mxu0 0.0
        %1309 = vmatpush1.msra.mxu0 0.0
        %1310 = vmatprep.subr.mxu0 0.0
        %1311 = vmatpush1.msra.mxu0 0.0
        %1312 = vmatprep.subr.mxu0 0.0
        %1313 = vmatpush1.msra.mxu0 0.0
        %1314 = vmatprep.subr.mxu0 0.0
        %1315 = vmatpush1.msra.mxu0 0.0
        %1316 = vmatprep.subr.mxu0 0.0
        %1317 = vmatpush1.msra.mxu0 0.0
        %1318 = vmatprep.subr.mxu0 0.0
        %1319 = vmatpush1.msra.mxu0 0.0
        %1320 = vmatprep.subr.mxu0 0.0
        %1321 = vmatpush1.msra.mxu0 0.0
        %1322 = vmatprep.subr.mxu0 0.0
        %1323 = vmatpush1.msra.mxu0 0.0
        %1324 = vmatprep.subr.mxu0 0.0
        %1325 = vmatpush1.msra.mxu0 0.0
        %1326 = vmatprep.subr.mxu0 0.0
        %1327 = vmatpush1.msra.mxu0 0.0
        %1328 = vmatprep.subr.mxu0 0.0
        %1329 = vmatpush1.msra.mxu0 0.0
        %1330 = vmatprep.subr.mxu0 0.0
        %1331 = vmatpush1.msra.mxu0 0.0
        %1332 = vmatprep.subr.mxu0 0.0
        %1333 = vmatpush1.msra.mxu0 0.0
        %1334 = vmatprep.subr.mxu0 0.0
        %1335 = vmatpush1.msra.mxu0 0.0
        %1336 = vmatprep.subr.mxu0 0.0
        %1337 = vmatpush1.msra.mxu0 0.0
        %1338 = vmatprep.subr.mxu0 0.0
        %1339 = vmatpush1.msra.mxu0 0.0
        %1340 = vmatprep.subr.mxu0 0.0
        %1341 = vmatpush1.msra.mxu0 0.0
        %1342 = vmatprep.subr.mxu0 0.0
        %1343 = vmatpush1.msra.mxu0 0.0
        %1344 = vmatprep.subr.mxu0 0.0
        %1345 = vmatpush1.msra.mxu0 0.0
        %1346 = vmatprep.subr.mxu0 0.0
        %1347 = vmatpush1.msra.mxu0 0.0
        %1348 = vmatprep.subr.mxu0 0.0
        %1349 = vmatpush1.msra.mxu0 0.0
        %1350 = vmatprep.subr.mxu0 0.0
        %1351 = vmatpush1.msra.mxu0 0.0
        %1352 = vmatprep.subr.mxu0 0.0
        %1353 = vmatpush1.msra.mxu0 0.0
        %1354 = vmatprep.subr.mxu0 0.0
        %1355 = vmatpush1.msra.mxu0 0.0
        %1356 = vmatprep.subr.mxu0 0.0
        %1357 = vmatpush1.msra.mxu0 0.0
        %1358 = vmatprep.subr.mxu0 0.0
        %1359 = vmatpush1.msra.mxu0 0.0
        %1360 = vmatprep.subr.mxu0 0.0
        %1361 = vmatpush1.msra.mxu0 0.0
        %1362 = vmatprep.mubr.f32.mxu0 0.0
        %1363 = vmatmul.mubr.f32.gmra.mrb[0].mxu0 %v1275
        %v1364 = vpop.f32.mrb[0].mxu0
        %v1365 = vadd.f32 0.0, %v1364
        %v1366 = vpop.f32.mrb[0].mxu0
        %1367 = vmatprep.mubr.f32.mxu0 0.0
        %1368 = vmatmul.mubr.f32.gmra.mrb[0].mxu0 %v1278
        %v1369 = vpop.f32.mrb[0].mxu0
        %v1370 = vadd.f32 0.0, %v1369
        %v1371 = vpop.f32.mrb[0].mxu0
        %1372 = vmatprep.mubr.f32.mxu0 0.0
        %1373 = vmatmul.mubr.f32.gmra.mrb[0].mxu0 %v1281
        %v1374 = vpop.f32.mrb[0].mxu0
        %v1375 = vadd.f32 0.0, %v1374
        %v1376 = vpop.f32.mrb[0].mxu0
        %1377 = vmatprep.mubr.f32.mxu0 0.0
        %1378 = vmatmul.mubr.f32.gmra.mrb[0].mxu0 %v1284
        %v1379 = vpop.f32.mrb[0].mxu0
        %v1380 = vadd.f32 0.0, %v1379
        %v1381 = vpop.f32.mrb[0].mxu0
        %1382 = vmatprep.mubr.f32.mxu0 0.0
        %1383 = vmatmul.mubr.f32.gmra.mrb[0].mxu0 %v1287
        %v1384 = vpop.f32.mrb[0].mxu0
        %v1385 = vadd.f32 0.0, %v1384
        %v1386 = vpop.f32.mrb[0].mxu0
        %1387 = vmatprep.mubr.f32.mxu0 0.0
        %1388 = vmatmul.mubr.f32.gmra.mrb[0].mxu0 %v1290
        %v1389 = vpop.f32.mrb[0].mxu0
        %v1390 = vadd.f32 0.0, %v1389
        %v1391 = vpop.f32.mrb[0].mxu0
        %1392 = vmatprep.mubr.f32.mxu0 0.0
        %1393 = vmatmul.mubr.f32.gmra.mrb[0].mxu0 %v1293
        %v1394 = vpop.f32.mrb[0].mxu0
        %v1395 = vadd.f32 0.0, %v1394
        %v1396 = vpop.f32.mrb[0].mxu0
        %1397 = vmatprep.mubr.f32.mxu0 0.0
        %1398 = vmatmul.mubr.f32.gmra.mrb[0].mxu0 %v1296
        %v1399 = vpop.f32.mrb[0].mxu0
        %v1400 = vadd.f32 0.0, %v1399
        %v1401 = vpop.f32.mrb[0].mxu0
        %1402 = vdwg.mxu0
        %v1403 = vmax.f32 %v1365, %v1375
        %v1404 = vmax.f32 %v1370, %v1380
        %v1405 = vmax.f32 %v1403, %v1385
        %v1406 = vmax.f32 %v1404, %v1390
        %v1407 = vmax.f32 %v1405, %v1395
        %v1408 = vmax.f32 %v1406, %v1400
        %s1409 = sadd.s32 0, 16
        %s1410 = scalar_lea.vmem [#allocation2], %s1409
        %1411 = vst.msk [vmem:[%s1410] sm:$0xff] %vm256, %v1407
        %1412 = vst.msk [vmem:[%s1410 + $0x8] sm:$0xff] %vm256, %v1408
        %s1413 = scalar_lea.vmem [#allocation2], 16
        %v1414 = vld [vmem:[%s1413] sm:$0xff]
        %v1415 = vld [vmem:[%s1413 + $0x8] sm:$0xff]
        %v1416 = vadd.f32 %v1414, %v1015
        %v1417 = vadd.f32 %v1415, %v1020
        %vm1418 = vcmp.ge.f32.partialorder %v1416, 0.0
        %vm1419 = vcmp.ge.f32.partialorder %v1417, 0.0
        %v1420 = vmul.f32 %v1416, 0.2
        %v1421 = vmul.f32 %v1417, 0.2
        %v1422 = vsel %vm1418, %v1416, %v1420
        %v1423 = vsel %vm1419, %v1417, %v1421
        %1424 = vst.msk [vmem:[%s1413] sm:$0xff] %vm256, %v1422
        %1425 = vst.msk [vmem:[%s1413 + $0x8] sm:$0xff] %vm256, %v1423
        %v1426 = vld [vmem:[%s1413] sm:$0xff]
        %v1427 = vld [vmem:[%s1413 + $0x8] sm:$0xff]
        %v1428 = vmul.f32 %v1426, %v1426
        %v1429 = vmul.f32 %v1427, %v1427
        %v1430 = vsel %vm256, %v1428, 0.0
        %1431 = vadd.xlane.f32.xlu0 %v1430
        %v1432 = vpop.xlane.xlu0 %1431
        %v1433 = vsel %vm256, %v1429, 0.0
        %1434 = vadd.xlane.f32.xlu0 %v1433
        %v1435 = vpop.xlane.xlu0 %1434
        %v1436 = vadd.f32 %v1426, %v1426
        %v1437 = vadd.f32 %v1427, %v1427
        %v1438 = vsub.f32 0.0, %v1432
        %v1439 = vsub.f32 0.0, %v1435
        %v1440 = vsel %vm256, %v1436, %v1438
        %v1441 = vsel %vm256, %v1437, %v1439
        %v1442 = vsel %vm256, %v1426, 1.0
        %v1443 = vsel %vm256, %v1427, 1.0
        %1444 = vst.msk [vmem:[#allocation3] sm:$0xff] %vm271, %v1442
        %1445 = vst.msk [vmem:[#allocation3 + $0x8] sm:$0xff] %vm271, %v1443
        %s1446 = scalar_lea.vmem %s1, 16
        %v1447 = vld [vmem:[%s1446] sm:$0xff]
        %v1449 = vsel %vm256, %v1426, 0
        %v1452 = vsel %vm256, %v1427, 0
        %1454 = vmatprep.subr.mxu0 0.0
        %1455 = vmatpush1.msra.mxu0 %v1447
        %1456 = vmatprep.subr.mxu0 0.0
        %1457 = vmatpush1.msra.mxu0 0.0
        %1458 = vmatprep.subr.mxu0 0.0
        %1459 = vmatpush1.msra.mxu0 0.0
        %1460 = vmatprep.subr.mxu0 0.0
        %1461 = vmatpush1.msra.mxu0 0.0
        %1462 = vmatprep.subr.mxu0 0.0
        %1463 = vmatpush1.msra.mxu0 0.0
        %1464 = vmatprep.subr.mxu0 0.0
        %1465 = vmatpush1.msra.mxu0 0.0
        %1466 = vmatprep.subr.mxu0 0.0
        %1467 = vmatpush1.msra.mxu0 0.0
        %1468 = vmatprep.subr.mxu0 0.0
        %1469 = vmatpush1.msra.mxu0 0.0
        %1470 = vmatprep.subr.mxu0 0.0
        %1471 = vmatpush1.msra.mxu0 0.0
        %1472 = vmatprep.subr.mxu0 0.0
        %1473 = vmatpush1.msra.mxu0 0.0
        %1474 = vmatprep.subr.mxu0 0.0
        %1475 = vmatpush1.msra.mxu0 0.0
        %1476 = vmatprep.subr.mxu0 0.0
        %1477 = vmatpush1.msra.mxu0 0.0
        %1478 = vmatprep.subr.mxu0 0.0
        %1479 = vmatpush1.msra.mxu0 0.0
        %1480 = vmatprep.subr.mxu0 0.0
        %1481 = vmatpush1.msra.mxu0 0.0
        %1482 = vmatprep.subr.mxu0 0.0
        %1483 = vmatpush1.msra.mxu0 0.0
        %1484 = vmatprep.subr.mxu0 0.0
        %1485 = vmatpush1.msra.mxu0 0.0
        %1486 = vmatprep.subr.mxu0 0.0
        %1487 = vmatpush1.msra.mxu0 0.0
        %1488 = vmatprep.subr.mxu0 0.0
        %1489 = vmatpush1.msra.mxu0 0.0
        %1490 = vmatprep.subr.mxu0 0.0
        %1491 = vmatpush1.msra.mxu0 0.0
        %1492 = vmatprep.subr.mxu0 0.0
        %1493 = vmatpush1.msra.mxu0 0.0
        %1494 = vmatprep.subr.mxu0 0.0
        %1495 = vmatpush1.msra.mxu0 0.0
        %1496 = vmatprep.subr.mxu0 0.0
        %1497 = vmatpush1.msra.mxu0 0.0
        %1498 = vmatprep.subr.mxu0 0.0
        %1499 = vmatpush1.msra.mxu0 0.0
        %1500 = vmatprep.subr.mxu0 0.0
        %1501 = vmatpush1.msra.mxu0 0.0
        %1502 = vmatprep.subr.mxu0 0.0
        %1503 = vmatpush1.msra.mxu0 0.0
        %1504 = vmatprep.subr.mxu0 0.0
        %1505 = vmatpush1.msra.mxu0 0.0
        %1506 = vmatprep.subr.mxu0 0.0
        %1507 = vmatpush1.msra.mxu0 0.0
        %1508 = vmatprep.subr.mxu0 0.0
        %1509 = vmatpush1.msra.mxu0 0.0
        %1510 = vmatprep.subr.mxu0 0.0
        %1511 = vmatpush1.msra.mxu0 0.0
        %1512 = vmatprep.subr.mxu0 0.0
        %1513 = vmatpush1.msra.mxu0 0.0
        %1514 = vmatprep.subr.mxu0 0.0
        %1515 = vmatpush1.msra.mxu0 0.0
        %1516 = vmatprep.subr.mxu0 0.0
        %1517 = vmatpush1.msra.mxu0 0.0
        %1518 = vmatprep.mubr.f32.mxu0 0.0
        %1519 = vmatmul.mubr.f32.gmra.mrb[0].mxu0 %v1449
        %v1520 = vpop.f32.mrb[0].mxu0
        %v1521 = vadd.f32 0.0, %v1520
        %v1522 = vpop.f32.mrb[0].mxu0
        %1523 = vmatprep.mubr.f32.mxu0 0.0
        %1524 = vmatmul.mubr.f32.gmra.mrb[0].mxu0 %v1452
        %v1525 = vpop.f32.mrb[0].mxu0
        %v1526 = vadd.f32 0.0, %v1525
        %v1527 = vpop.f32.mrb[0].mxu0
        %1528 = vdwg.mxu0
        %s1529 = scalar_lea.vmem %s2, 16
        %v1530 = vld [vmem:[%s1529] sm:$0xff]
        %v1531 = vld [vmem:[%s3 + $0x2] sm:$0x1]
        %v1532 = vlaneseq
        %v1533 = vshrl.u32 %v1532, 7
        %v1534 = vsub.s32 0, %v1533
        %v1535 = vrot.slane %v1531, %v1534
        %1536 = vmatprep.subr.mxu0 0.0
        %1537 = vmatpush1.msra.mxu0 %v1530
        %1538 = vmatprep.subr.mxu0 0.0
        %1539 = vmatpush1.msra.mxu0 0.0
        %1540 = vmatprep.subr.mxu0 0.0
        %1541 = vmatpush1.msra.mxu0 0.0
        %1542 = vmatprep.subr.mxu0 0.0
        %1543 = vmatpush1.msra.mxu0 0.0
        %1544 = vmatprep.subr.mxu0 0.0
        %1545 = vmatpush1.msra.mxu0 0.0
        %1546 = vmatprep.subr.mxu0 0.0
        %1547 = vmatpush1.msra.mxu0 0.0
        %1548 = vmatprep.subr.mxu0 0.0
        %1549 = vmatpush1.msra.mxu0 0.0
        %1550 = vmatprep.subr.mxu0 0.0
        %1551 = vmatpush1.msra.mxu0 0.0
        %1552 = vmatprep.subr.mxu0 0.0
        %1553 = vmatpush1.msra.mxu0 0.0
        %1554 = vmatprep.subr.mxu0 0.0
        %1555 = vmatpush1.msra.mxu0 0.0
        %1556 = vmatprep.subr.mxu0 0.0
        %1557 = vmatpush1.msra.mxu0 0.0
        %1558 = vmatprep.subr.mxu0 0.0
        %1559 = vmatpush1.msra.mxu0 0.0
        %1560 = vmatprep.subr.mxu0 0.0
        %1561 = vmatpush1.msra.mxu0 0.0
        %1562 = vmatprep.subr.mxu0 0.0
        %1563 = vmatpush1.msra.mxu0 0.0
        %1564 = vmatprep.subr.mxu0 0.0
        %1565 = vmatpush1.msra.mxu0 0.0
        %1566 = vmatprep.subr.mxu0 0.0
        %1567 = vmatpush1.msra.mxu0 0.0
        %1568 = vmatprep.subr.mxu0 0.0
        %1569 = vmatpush1.msra.mxu0 0.0
        %1570 = vmatprep.subr.mxu0 0.0
        %1571 = vmatpush1.msra.mxu0 0.0
        %1572 = vmatprep.subr.mxu0 0.0
        %1573 = vmatpush1.msra.mxu0 0.0
        %1574 = vmatprep.subr.mxu0 0.0
        %1575 = vmatpush1.msra.mxu0 0.0
        %1576 = vmatprep.subr.mxu0 0.0
        %1577 = vmatpush1.msra.mxu0 0.0
        %1578 = vmatprep.subr.mxu0 0.0
        %1579 = vmatpush1.msra.mxu0 0.0
        %1580 = vmatprep.subr.mxu0 0.0
        %1581 = vmatpush1.msra.mxu0 0.0
        %1582 = vmatprep.subr.mxu0 0.0
        %1583 = vmatpush1.msra.mxu0 0.0
        %1584 = vmatprep.subr.mxu0 0.0
        %1585 = vmatpush1.msra.mxu0 0.0
        %1586 = vmatprep.subr.mxu0 0.0
        %1587 = vmatpush1.msra.mxu0 0.0
        %1588 = vmatprep.subr.mxu0 0.0
        %1589 = vmatpush1.msra.mxu0 0.0
        %1590 = vmatprep.subr.mxu0 0.0
        %1591 = vmatpush1.msra.mxu0 0.0
        %1592 = vmatprep.subr.mxu0 0.0
        %1593 = vmatpush1.msra.mxu0 0.0
        %1594 = vmatprep.subr.mxu0 0.0
        %1595 = vmatpush1.msra.mxu0 0.0
        %1596 = vmatprep.subr.mxu0 0.0
        %1597 = vmatpush1.msra.mxu0 0.0
        %1598 = vmatprep.subr.mxu0 0.0
        %1599 = vmatpush1.msra.mxu0 0.0
        %1600 = vmatprep.mubr.f32.mxu0 0.0
        %1601 = vmatmul.mubr.f32.gmra.mrb[0].mxu0 %v1449
        %v1602 = vpop.f32.mrb[0].mxu0
        %v1603 = vadd.f32 %v1535, %v1602
        %v1604 = vpop.f32.mrb[0].mxu0
        %1605 = vmatprep.mubr.f32.mxu0 0.0
        %1606 = vmatmul.mubr.f32.gmra.mrb[0].mxu0 %v1452
        %v1607 = vpop.f32.mrb[0].mxu0
        %v1608 = vadd.f32 %v1535, %v1607
        %v1609 = vpop.f32.mrb[0].mxu0
        %1610 = vdwg.mxu0
        %v1611 = vld [vmem:[#allocation3] sm:$0xff]
        %v1612 = vld [vmem:[#allocation3 + $0x8] sm:$0xff]
        %v1614 = vsel %vm271, %v1611, 0
        %v1617 = vsel %vm271, %v1612, 0
        %v1620 = vsel %vm271, %v1440, 0
        %v1623 = vsel %vm271, %v1441, 0
        %1625 = vmatprep.subr.mxu0 0.0
        %1626 = vmatpush1.xpose.msra.mxu0 %v1620
        %1627 = vmatprep.subr.mxu0 0.0
        %1628 = vmatpush1.xpose.msra.mxu0 %v1623
        %1629 = vmatprep.subr.mxu0 0.0
        %1630 = vmatpush1.xpose.msra.mxu0 0.0
        %1631 = vmatprep.subr.mxu0 0.0
        %1632 = vmatpush1.xpose.msra.mxu0 0.0
        %1633 = vmatprep.subr.mxu0 0.0
        %1634 = vmatpush1.xpose.msra.mxu0 0.0
        %1635 = vmatprep.subr.mxu0 0.0
        %1636 = vmatpush1.xpose.msra.mxu0 0.0
        %1637 = vmatprep.subr.mxu0 0.0
        %1638 = vmatpush1.xpose.msra.mxu0 0.0
        %1639 = vmatprep.subr.mxu0 0.0
        %1640 = vmatpush1.xpose.msra.mxu0 0.0
        %1641 = vmatprep.subr.mxu0 0.0
        %1642 = vmatpush1.xpose.msra.mxu0 0.0
        %1643 = vmatprep.subr.mxu0 0.0
        %1644 = vmatpush1.xpose.msra.mxu0 0.0
        %1645 = vmatprep.subr.mxu0 0.0
        %1646 = vmatpush1.xpose.msra.mxu0 0.0
        %1647 = vmatprep.subr.mxu0 0.0
        %1648 = vmatpush1.xpose.msra.mxu0 0.0
        %1649 = vmatprep.subr.mxu0 0.0
        %1650 = vmatpush1.xpose.msra.mxu0 0.0
        %1651 = vmatprep.subr.mxu0 0.0
        %1652 = vmatpush1.xpose.msra.mxu0 0.0
        %1653 = vmatprep.subr.mxu0 0.0
        %1654 = vmatpush1.xpose.msra.mxu0 0.0
        %1655 = vmatprep.subr.mxu0 0.0
        %1656 = vmatpush1.xpose.msra.mxu0 0.0
        %1657 = vmatprep.subr.mxu0 0.0
        %1658 = vmatpush1.xpose.msra.mxu0 0.0
        %1659 = vmatprep.subr.mxu0 0.0
        %1660 = vmatpush1.xpose.msra.mxu0 0.0
        %1661 = vmatprep.subr.mxu0 0.0
        %1662 = vmatpush1.xpose.msra.mxu0 0.0
        %1663 = vmatprep.subr.mxu0 0.0
        %1664 = vmatpush1.xpose.msra.mxu0 0.0
        %1665 = vmatprep.subr.mxu0 0.0
        %1666 = vmatpush1.xpose.msra.mxu0 0.0
        %1667 = vmatprep.subr.mxu0 0.0
        %1668 = vmatpush1.xpose.msra.mxu0 0.0
        %1669 = vmatprep.subr.mxu0 0.0
        %1670 = vmatpush1.xpose.msra.mxu0 0.0
        %1671 = vmatprep.subr.mxu0 0.0
        %1672 = vmatpush1.xpose.msra.mxu0 0.0
        %1673 = vmatprep.subr.mxu0 0.0
        %1674 = vmatpush1.xpose.msra.mxu0 0.0
        %1675 = vmatprep.subr.mxu0 0.0
        %1676 = vmatpush1.xpose.msra.mxu0 0.0
        %1677 = vmatprep.subr.mxu0 0.0
        %1678 = vmatpush1.xpose.msra.mxu0 0.0
        %1679 = vmatprep.subr.mxu0 0.0
        %1680 = vmatpush1.xpose.msra.mxu0 0.0
        %1681 = vmatprep.subr.mxu0 0.0
        %1682 = vmatpush1.xpose.msra.mxu0 0.0
        %1683 = vmatprep.subr.mxu0 0.0
        %1684 = vmatpush1.xpose.msra.mxu0 0.0
        %1685 = vmatprep.subr.mxu0 0.0
        %1686 = vmatpush1.xpose.msra.mxu0 0.0
        %1687 = vmatprep.subr.mxu0 0.0
        %1688 = vmatpush1.xpose.msra.mxu0 0.0
        %1689 = vmatprep.mubr.f32.mxu0 0.0
        %1690 = vmatmul.mubr.f32.gmra.mrb[0].mxu0 %v1614
        %v1691 = vpop.f32.mrb[0].mxu0
        %v1692 = vadd.f32 0.0, %v1691
        %v1693 = vpop.f32.mrb[0].mxu0
        %1694 = vmatprep.mubr.f32.mxu0 0.0
        %1695 = vmatmul.mubr.f32.gmra.mrb[0].mxu0 %v1617
        %v1696 = vpop.f32.mrb[0].mxu0
        %v1697 = vadd.f32 0.0, %v1696
        %v1698 = vpop.f32.mrb[0].mxu0
        %1699 = vdwg.mxu0
        %vm1702 = vcmp.ge.s32.totalorder %v1692, 0
        %vm1703 = vcmp.ge.s32.totalorder %v1697, 0
        %v1704 = vxor.u32 %v1692, 2147483647
        %v1705 = vxor.u32 %v1697, 2147483647
        %v1706 = vsel %vm1702, %v1692, %v1704
        %v1707 = vsel %vm1703, %v1697, %v1705
        %v1708 = vand.u32 %v1706, 4294967280
        %v1709 = vand.u32 %v1707, 4294967280
        %v1710 = vor.u32 %v1708, %v251
        %v1711 = vor.u32 %v1709, %v251
        %v1712 = vsel %vm538, %v1710, 2147483648
        %v1713 = vand.u32 %v1712, 65535
        %v1714 = vshra.s32 %v1712, 16
        %v1715 = vcvt.s32.f32 %v1713
        %v1716 = vcvt.s32.f32 %v1714
        %1717 = vmax.xlane.f32.xlu0 %v1716
        %v1718 = vpop.xlane.xlu0 %1717
        %vm1719 = vcmp.eq.f32.partialorder %v1716, %v1718
        %v1720 = vsel %vm1719, %v1715, -inf
        %1721 = vmax.xlane.f32.xlu0 %v1720
        %v1722 = vpop.xlane.xlu0 %1721
        %v1723 = vcvt.f32.s32 %v1722
        %v1724 = vcvt.f32.s32 %v1718
        %v1725 = vshll.u32 %v1724, 16
        %v1726 = vadd.s32 %v1725, %v1723
        %v1727 = vsel %vm538, %v1711, 2147483648
        %v1728 = vand.u32 %v1727, 65535
        %v1729 = vshra.s32 %v1727, 16
        %v1730 = vcvt.s32.f32 %v1728
        %v1731 = vcvt.s32.f32 %v1729
        %1732 = vmax.xlane.f32.xlu0 %v1731
        %v1733 = vpop.xlane.xlu0 %1732
        %vm1734 = vcmp.eq.f32.partialorder %v1731, %v1733
        %v1735 = vsel %vm1734, %v1730, -inf
        %1736 = vmax.xlane.f32.xlu0 %v1735
        %v1737 = vpop.xlane.xlu0 %1736
        %v1738 = vcvt.f32.s32 %v1737
        %v1739 = vcvt.f32.s32 %v1733
        %v1740 = vshll.u32 %v1739, 16
        %v1741 = vadd.s32 %v1740, %v1738
        %vm1742 = vcmp.eq.s32.totalorder %v1710, %v1726
        %vm1743 = vcmp.eq.s32.totalorder %v1711, %v1741
        %v1744 = vsel %vm1742, 1, 0
        %v1745 = vsel %vm1743, 1, 0
        %v1746 = vcvt.s32.f32 %v1744
        %v1747 = vcvt.s32.f32 %v1745
        %v1748 = vsel %vm1742, 2147483648, %v1710
        %v1749 = vsel %vm1743, 2147483648, %v1711
        %v1750 = vsel %vm538, %v1748, 2147483648
        %v1751 = vand.u32 %v1750, 65535
        %v1752 = vshra.s32 %v1750, 16
        %v1753 = vcvt.s32.f32 %v1751
        %v1754 = vcvt.s32.f32 %v1752
        %1755 = vmax.xlane.f32.xlu0 %v1754
        %v1756 = vpop.xlane.xlu0 %1755
        %vm1757 = vcmp.eq.f32.partialorder %v1754, %v1756
        %v1758 = vsel %vm1757, %v1753, -inf
        %1759 = vmax.xlane.f32.xlu0 %v1758
        %v1760 = vpop.xlane.xlu0 %1759
        %v1761 = vcvt.f32.s32 %v1760
        %v1762 = vcvt.f32.s32 %v1756
        %v1763 = vshll.u32 %v1762, 16
        %v1764 = vadd.s32 %v1763, %v1761
        %v1765 = vsel %vm538, %v1749, 2147483648
        %v1766 = vand.u32 %v1765, 65535
        %v1767 = vshra.s32 %v1765, 16
        %v1768 = vcvt.s32.f32 %v1766
        %v1769 = vcvt.s32.f32 %v1767
        %1770 = vmax.xlane.f32.xlu0 %v1769
        %v1771 = vpop.xlane.xlu0 %1770
        %vm1772 = vcmp.eq.f32.partialorder %v1769, %v1771
        %v1773 = vsel %vm1772, %v1768, -inf
        %1774 = vmax.xlane.f32.xlu0 %v1773
        %v1775 = vpop.xlane.xlu0 %1774
        %v1776 = vcvt.f32.s32 %v1775
        %v1777 = vcvt.f32.s32 %v1771
        %v1778 = vshll.u32 %v1777, 16
        %v1779 = vadd.s32 %v1778, %v1776
        %vm1780 = vcmp.eq.s32.totalorder %v1748, %v1764
        %vm1781 = vcmp.eq.s32.totalorder %v1749, %v1779
        %v1782 = vsel %vm1780, 1, 0
        %v1783 = vsel %vm1781, 1, 0
        %v1784 = vcvt.s32.f32 %v1782
        %v1785 = vcvt.s32.f32 %v1783
        %v1786 = vsel %vm1780, 2147483648, %v1748
        %v1787 = vsel %vm1781, 2147483648, %v1749
        %v1788 = vsel %vm538, %v1786, 2147483648
        %v1789 = vand.u32 %v1788, 65535
        %v1790 = vshra.s32 %v1788, 16
        %v1791 = vcvt.s32.f32 %v1789
        %v1792 = vcvt.s32.f32 %v1790
        %1793 = vmax.xlane.f32.xlu0 %v1792
        %v1794 = vpop.xlane.xlu0 %1793
        %vm1795 = vcmp.eq.f32.partialorder %v1792, %v1794
        %v1796 = vsel %vm1795, %v1791, -inf
        %1797 = vmax.xlane.f32.xlu0 %v1796
        %v1798 = vpop.xlane.xlu0 %1797
        %v1799 = vcvt.f32.s32 %v1798
        %v1800 = vcvt.f32.s32 %v1794
        %v1801 = vshll.u32 %v1800, 16
        %v1802 = vadd.s32 %v1801, %v1799
        %v1803 = vsel %vm538, %v1787, 2147483648
        %v1804 = vand.u32 %v1803, 65535
        %v1805 = vshra.s32 %v1803, 16
        %v1806 = vcvt.s32.f32 %v1804
        %v1807 = vcvt.s32.f32 %v1805
        %1808 = vmax.xlane.f32.xlu0 %v1807
        %v1809 = vpop.xlane.xlu0 %1808
        %vm1810 = vcmp.eq.f32.partialorder %v1807, %v1809
        %v1811 = vsel %vm1810, %v1806, -inf
        %1812 = vmax.xlane.f32.xlu0 %v1811
        %v1813 = vpop.xlane.xlu0 %1812
        %v1814 = vcvt.f32.s32 %v1813
        %v1815 = vcvt.f32.s32 %v1809
        %v1816 = vshll.u32 %v1815, 16
        %v1817 = vadd.s32 %v1816, %v1814
        %vm1818 = vcmp.eq.s32.totalorder %v1786, %v1802
        %vm1819 = vcmp.eq.s32.totalorder %v1787, %v1817
        %v1820 = vsel %vm1818, 1, 0
        %v1821 = vsel %vm1819, 1, 0
        %v1822 = vcvt.s32.f32 %v1820
        %v1823 = vcvt.s32.f32 %v1821
        %v1824 = vsel %vm1818, 2147483648, %v1786
        %v1825 = vsel %vm1819, 2147483648, %v1787
        %v1826 = vsel %vm538, %v1824, 2147483648
        %v1827 = vand.u32 %v1826, 65535
        %v1828 = vshra.s32 %v1826, 16
        %v1829 = vcvt.s32.f32 %v1827
        %v1830 = vcvt.s32.f32 %v1828
        %1831 = vmax.xlane.f32.xlu0 %v1830
        %v1832 = vpop.xlane.xlu0 %1831
        %vm1833 = vcmp.eq.f32.partialorder %v1830, %v1832
        %v1834 = vsel %vm1833, %v1829, -inf
        %1835 = vmax.xlane.f32.xlu0 %v1834
        %v1836 = vpop.xlane.xlu0 %1835
        %v1837 = vcvt.f32.s32 %v1836
        %v1838 = vcvt.f32.s32 %v1832
        %v1839 = vshll.u32 %v1838, 16
        %v1840 = vadd.s32 %v1839, %v1837
        %v1841 = vsel %vm538, %v1825, 2147483648
        %v1842 = vand.u32 %v1841, 65535
        %v1843 = vshra.s32 %v1841, 16
        %v1844 = vcvt.s32.f32 %v1842
        %v1845 = vcvt.s32.f32 %v1843
        %1846 = vmax.xlane.f32.xlu0 %v1845
        %v1847 = vpop.xlane.xlu0 %1846
        %vm1848 = vcmp.eq.f32.partialorder %v1845, %v1847
        %v1849 = vsel %vm1848, %v1844, -inf
        %1850 = vmax.xlane.f32.xlu0 %v1849
        %v1851 = vpop.xlane.xlu0 %1850
        %v1852 = vcvt.f32.s32 %v1851
        %v1853 = vcvt.f32.s32 %v1847
        %v1854 = vshll.u32 %v1853, 16
        %v1855 = vadd.s32 %v1854, %v1852
        %vm1856 = vcmp.eq.s32.totalorder %v1824, %v1840
        %vm1857 = vcmp.eq.s32.totalorder %v1825, %v1855
        %v1858 = vsel %vm1856, 1, 0
        %v1859 = vsel %vm1857, 1, 0
        %v1860 = vcvt.s32.f32 %v1858
        %v1861 = vcvt.s32.f32 %v1859
        %v1863 = vsel %vm538, %v1746, 0
        %v1866 = vsel %vm538, %v1747, 0
        %v1869 = vsel %vm538, %v1784, 0
        %v1872 = vsel %vm538, %v1785, 0
        %v1875 = vsel %vm538, %v1822, 0
        %v1878 = vsel %vm538, %v1823, 0
        %v1881 = vsel %vm538, %v1860, 0
        %v1884 = vsel %vm538, %v1861, 0
        %1886 = vmatprep.subr.mxu0 0.0
        %1887 = vmatpush1.msra.mxu0 %v1521
        %1888 = vmatprep.subr.mxu0 0.0
        %1889 = vmatpush1.msra.mxu0 %v1526
        %1890 = vmatprep.subr.mxu0 0.0
        %1891 = vmatpush1.msra.mxu0 0.0
        %1892 = vmatprep.subr.mxu0 0.0
        %1893 = vmatpush1.msra.mxu0 0.0
        %1894 = vmatprep.subr.mxu0 0.0
        %1895 = vmatpush1.msra.mxu0 0.0
        %1896 = vmatprep.subr.mxu0 0.0
        %1897 = vmatpush1.msra.mxu0 0.0
        %1898 = vmatprep.subr.mxu0 0.0
        %1899 = vmatpush1.msra.mxu0 0.0
        %1900 = vmatprep.subr.mxu0 0.0
        %1901 = vmatpush1.msra.mxu0 0.0
        %1902 = vmatprep.subr.mxu0 0.0
        %1903 = vmatpush1.msra.mxu0 0.0
        %1904 = vmatprep.subr.mxu0 0.0
        %1905 = vmatpush1.msra.mxu0 0.0
        %1906 = vmatprep.subr.mxu0 0.0
        %1907 = vmatpush1.msra.mxu0 0.0
        %1908 = vmatprep.subr.mxu0 0.0
        %1909 = vmatpush1.msra.mxu0 0.0
        %1910 = vmatprep.subr.mxu0 0.0
        %1911 = vmatpush1.msra.mxu0 0.0
        %1912 = vmatprep.subr.mxu0 0.0
        %1913 = vmatpush1.msra.mxu0 0.0
        %1914 = vmatprep.subr.mxu0 0.0
        %1915 = vmatpush1.msra.mxu0 0.0
        %1916 = vmatprep.subr.mxu0 0.0
        %1917 = vmatpush1.msra.mxu0 0.0
        %1918 = vmatprep.subr.mxu0 0.0
        %1919 = vmatpush1.msra.mxu0 0.0
        %1920 = vmatprep.subr.mxu0 0.0
        %1921 = vmatpush1.msra.mxu0 0.0
        %1922 = vmatprep.subr.mxu0 0.0
        %1923 = vmatpush1.msra.mxu0 0.0
        %1924 = vmatprep.subr.mxu0 0.0
        %1925 = vmatpush1.msra.mxu0 0.0
        %1926 = vmatprep.subr.mxu0 0.0
        %1927 = vmatpush1.msra.mxu0 0.0
        %1928 = vmatprep.subr.mxu0 0.0
        %1929 = vmatpush1.msra.mxu0 0.0
        %1930 = vmatprep.subr.mxu0 0.0
        %1931 = vmatpush1.msra.mxu0 0.0
        %1932 = vmatprep.subr.mxu0 0.0
        %1933 = vmatpush1.msra.mxu0 0.0
        %1934 = vmatprep.subr.mxu0 0.0
        %1935 = vmatpush1.msra.mxu0 0.0
        %1936 = vmatprep.subr.mxu0 0.0
        %1937 = vmatpush1.msra.mxu0 0.0
        %1938 = vmatprep.subr.mxu0 0.0
        %1939 = vmatpush1.msra.mxu0 0.0
        %1940 = vmatprep.subr.mxu0 0.0
        %1941 = vmatpush1.msra.mxu0 0.0
        %1942 = vmatprep.subr.mxu0 0.0
        %1943 = vmatpush1.msra.mxu0 0.0
        %1944 = vmatprep.subr.mxu0 0.0
        %1945 = vmatpush1.msra.mxu0 0.0
        %1946 = vmatprep.subr.mxu0 0.0
        %1947 = vmatpush1.msra.mxu0 0.0
        %1948 = vmatprep.subr.mxu0 0.0
        %1949 = vmatpush1.msra.mxu0 0.0
        %1950 = vmatprep.mubr.f32.mxu0 0.0
        %1951 = vmatmul.mubr.f32.gmra.mrb[0].mxu0 %v1863
        %v1952 = vpop.f32.mrb[0].mxu0
        %v1953 = vadd.f32 0.0, %v1952
        %v1954 = vpop.f32.mrb[0].mxu0
        %1955 = vmatprep.mubr.f32.mxu0 0.0
        %1956 = vmatmul.mubr.f32.gmra.mrb[0].mxu0 %v1866
        %v1957 = vpop.f32.mrb[0].mxu0
        %v1958 = vadd.f32 0.0, %v1957
        %v1959 = vpop.f32.mrb[0].mxu0
        %1960 = vmatprep.mubr.f32.mxu0 0.0
        %1961 = vmatmul.mubr.f32.gmra.mrb[0].mxu0 %v1869
        %v1962 = vpop.f32.mrb[0].mxu0
        %v1963 = vadd.f32 0.0, %v1962
        %v1964 = vpop.f32.mrb[0].mxu0
        %1965 = vmatprep.mubr.f32.mxu0 0.0
        %1966 = vmatmul.mubr.f32.gmra.mrb[0].mxu0 %v1872
        %v1967 = vpop.f32.mrb[0].mxu0
        %v1968 = vadd.f32 0.0, %v1967
        %v1969 = vpop.f32.mrb[0].mxu0
        %1970 = vmatprep.mubr.f32.mxu0 0.0
        %1971 = vmatmul.mubr.f32.gmra.mrb[0].mxu0 %v1875
        %v1972 = vpop.f32.mrb[0].mxu0
        %v1973 = vadd.f32 0.0, %v1972
        %v1974 = vpop.f32.mrb[0].mxu0
        %1975 = vmatprep.mubr.f32.mxu0 0.0
        %1976 = vmatmul.mubr.f32.gmra.mrb[0].mxu0 %v1878
        %v1977 = vpop.f32.mrb[0].mxu0
        %v1978 = vadd.f32 0.0, %v1977
        %v1979 = vpop.f32.mrb[0].mxu0
        %1980 = vmatprep.mubr.f32.mxu0 0.0
        %1981 = vmatmul.mubr.f32.gmra.mrb[0].mxu0 %v1881
        %v1982 = vpop.f32.mrb[0].mxu0
        %v1983 = vadd.f32 0.0, %v1982
        %v1984 = vpop.f32.mrb[0].mxu0
        %1985 = vmatprep.mubr.f32.mxu0 0.0
        %1986 = vmatmul.mubr.f32.gmra.mrb[0].mxu0 %v1884
        %v1987 = vpop.f32.mrb[0].mxu0
        %v1988 = vadd.f32 0.0, %v1987
        %v1989 = vpop.f32.mrb[0].mxu0
        %1990 = vdwg.mxu0
        %v1991 = vmax.f32 %v1953, %v1963
        %v1992 = vmax.f32 %v1958, %v1968
        %v1993 = vmax.f32 %v1991, %v1973
        %v1994 = vmax.f32 %v1992, %v1978
        %v1995 = vmax.f32 %v1993, %v1983
        %v1996 = vmax.f32 %v1994, %v1988
        %s1997 = sadd.s32 0, 32
        %s1998 = scalar_lea.vmem [#allocation2], %s1997
        %1999 = vst.msk [vmem:[%s1998] sm:$0xff] %vm256, %v1995
        %2000 = vst.msk [vmem:[%s1998 + $0x8] sm:$0xff] %vm256, %v1996
        %s2001 = scalar_lea.vmem [#allocation2], 32
        %v2002 = vld [vmem:[%s2001] sm:$0xff]
        %v2003 = vld [vmem:[%s2001 + $0x8] sm:$0xff]
        %v2004 = vadd.f32 %v2002, %v1603
        %v2005 = vadd.f32 %v2003, %v1608
        %vm2006 = vcmp.ge.f32.partialorder %v2004, 0.0
        %vm2007 = vcmp.ge.f32.partialorder %v2005, 0.0
        %v2008 = vmul.f32 %v2004, 0.2
        %v2009 = vmul.f32 %v2005, 0.2
        %v2010 = vsel %vm2006, %v2004, %v2008
        %v2011 = vsel %vm2007, %v2005, %v2009
        %2012 = vst.msk [vmem:[%s2001] sm:$0xff] %vm256, %v2010
        %2013 = vst.msk [vmem:[%s2001 + $0x8] sm:$0xff] %vm256, %v2011
        %v2014 = vld [vmem:[%s4] sm:$0xff]
        %v2015 = vld [vmem:[%s4 + $0x8] sm:$0xff]
        %v2016 = vld [vmem:[%s4 + $0x10] sm:$0xff]
        %v2017 = vld [vmem:[%s5] sm:$0x1]
        %v2018 = vld [vmem:[#allocation2] sm:$0xff]
        %v2019 = vld [vmem:[#allocation2 + $0x8] sm:$0xff]
        %v2020 = vld [vmem:[%s1410] sm:$0xff]
        %v2021 = vld [vmem:[%s1410 + $0x8] sm:$0xff]
        %v2022 = vld [vmem:[%s1998] sm:$0xff]
        %v2023 = vld [vmem:[%s1998 + $0x8] sm:$0xff]
        %2026 = vrot.lane.b32.xlu0 %v2020, 8
        %v2027 = vpop.permute.xlu0 %2026
        %2028 = vrot.lane.b32.xlu0 %v2021, 8
        %v2029 = vpop.permute.xlu0 %2028
        %2034 = vrot.lane.b32.xlu0 %v2022, 16
        %v2035 = vpop.permute.xlu0 %2034
        %2036 = vrot.lane.b32.xlu0 %v2023, 16
        %v2037 = vpop.permute.xlu0 %2036
        %v2040 = vsel %vm256, %v2018, %v2027
        %v2041 = vsel %vm256, %v2019, %v2029
        %v2042 = vsel %vm538, %v2040, %v2035
        %v2043 = vsel %vm538, %v2041, %v2037
        %v2045 = vlaneseq
        %v2046 = vshrl.u32 %v2045, 7
        %v2047 = vsub.s32 0, %v2046
        %v2048 = vrot.slane %v2017, %v2047
        %vm2050 = vcmask 195584
        %v2052 = vsel %vm2050, %v2042, 0
        %v2055 = vsel %vm2050, %v2043, 0
        %2057 = vmatprep.subr.mxu0 0.0
        %2058 = vmatpush1.msra.mxu0 %v2014
        %2059 = vmatprep.subr.mxu0 0.0
        %2060 = vmatpush1.msra.mxu0 %v2015
        %2061 = vmatprep.subr.mxu0 0.0
        %2062 = vmatpush1.msra.mxu0 %v2016
        %2063 = vmatprep.subr.mxu0 0.0
        %2064 = vmatpush1.msra.mxu0 0.0
        %2065 = vmatprep.subr.mxu0 0.0
        %2066 = vmatpush1.msra.mxu0 0.0
        %2067 = vmatprep.subr.mxu0 0.0
        %2068 = vmatpush1.msra.mxu0 0.0
        %2069 = vmatprep.subr.mxu0 0.0
        %2070 = vmatpush1.msra.mxu0 0.0
        %2071 = vmatprep.subr.mxu0 0.0
        %2072 = vmatpush1.msra.mxu0 0.0
        %2073 = vmatprep.subr.mxu0 0.0
        %2074 = vmatpush1.msra.mxu0 0.0
        %2075 = vmatprep.subr.mxu0 0.0
        %2076 = vmatpush1.msra.mxu0 0.0
        %2077 = vmatprep.subr.mxu0 0.0
        %2078 = vmatpush1.msra.mxu0 0.0
        %2079 = vmatprep.subr.mxu0 0.0
        %2080 = vmatpush1.msra.mxu0 0.0
        %2081 = vmatprep.subr.mxu0 0.0
        %2082 = vmatpush1.msra.mxu0 0.0
        %2083 = vmatprep.subr.mxu0 0.0
        %2084 = vmatpush1.msra.mxu0 0.0
        %2085 = vmatprep.subr.mxu0 0.0
        %2086 = vmatpush1.msra.mxu0 0.0
        %2087 = vmatprep.subr.mxu0 0.0
        %2088 = vmatpush1.msra.mxu0 0.0
        %2089 = vmatprep.subr.mxu0 0.0
        %2090 = vmatpush1.msra.mxu0 0.0
        %2091 = vmatprep.subr.mxu0 0.0
        %2092 = vmatpush1.msra.mxu0 0.0
        %2093 = vmatprep.subr.mxu0 0.0
        %2094 = vmatpush1.msra.mxu0 0.0
        %2095 = vmatprep.subr.mxu0 0.0
        %2096 = vmatpush1.msra.mxu0 0.0
        %2097 = vmatprep.subr.mxu0 0.0
        %2098 = vmatpush1.msra.mxu0 0.0
        %2099 = vmatprep.subr.mxu0 0.0
        %2100 = vmatpush1.msra.mxu0 0.0
        %2101 = vmatprep.subr.mxu0 0.0
        %2102 = vmatpush1.msra.mxu0 0.0
        %2103 = vmatprep.subr.mxu0 0.0
        %2104 = vmatpush1.msra.mxu0 0.0
        %2105 = vmatprep.subr.mxu0 0.0
        %2106 = vmatpush1.msra.mxu0 0.0
        %2107 = vmatprep.subr.mxu0 0.0
        %2108 = vmatpush1.msra.mxu0 0.0
        %2109 = vmatprep.subr.mxu0 0.0
        %2110 = vmatpush1.msra.mxu0 0.0
        %2111 = vmatprep.subr.mxu0 0.0
        %2112 = vmatpush1.msra.mxu0 0.0
        %2113 = vmatprep.subr.mxu0 0.0
        %2114 = vmatpush1.msra.mxu0 0.0
        %2115 = vmatprep.subr.mxu0 0.0
        %2116 = vmatpush1.msra.mxu0 0.0
        %2117 = vmatprep.subr.mxu0 0.0
        %2118 = vmatpush1.msra.mxu0 0.0
        %2119 = vmatprep.subr.mxu0 0.0
        %2120 = vmatpush1.msra.mxu0 0.0
        %2121 = vmatprep.mubr.f32.mxu0 0.0
        %2122 = vmatmul.mubr.f32.gmra.mrb[0].mxu0 %v2052
        %v2123 = vpop.f32.mrb[0].mxu0
        %v2124 = vadd.f32 %v2048, %v2123
        %v2125 = vpop.f32.mrb[0].mxu0
        %2126 = vmatprep.mubr.f32.mxu0 0.0
        %2127 = vmatmul.mubr.f32.gmra.mrb[0].mxu0 %v2055
        %v2128 = vpop.f32.mrb[0].mxu0
        %v2129 = vadd.f32 %v2048, %v2128
        %v2130 = vpop.f32.mrb[0].mxu0
        %2131 = vdwg.mxu0
        %vm2132 = vcmp.ge.f32.partialorder %v2124, 0.0
        %vm2133 = vcmp.ge.f32.partialorder %v2129, 0.0
        %v2134 = vmul.f32 %v2124, 0.2
        %v2135 = vmul.f32 %v2129, 0.2
        %v2136 = vsel %vm2132, %v2124, %v2134
        %v2137 = vsel %vm2133, %v2129, %v2135
        %v2138 = vsel %vm538, %v2136, -inf
        %v2139 = vsel %vm538, %v2137, -inf
        %v2140 = vmax.f32 %v2138, %v2139
        %v2141 = vrot.slane %v2140, 4
        %v2142 = vmax.f32 %v2140, %v2141
        %v2143 = vrot.slane %v2142, 2
        %v2144 = vmax.f32 %v2142, %v2143
        %v2145 = vrot.slane %v2144, 1
        %v2146 = vmax.f32 %v2144, %v2145
        %vm2147 = vcmask 122880
        %2148 = vst.msk [vmem:[%s243] sm:$0x1] %vm2147, %v2146
        %s2149 = sand.u32 %s159, 1
        %s2150 = scalar_lea.sflag [#allocation5], %s2149
        %s2151 = sand.u32 %s159, 1
        %s2152 = scalar_lea.vmem [#allocation4], %s2151
        // Predicated region
        $region45: #{_heavy_da_call.1} parent=43 // pred_check
          %p2153 = pneg %p169
        $region46: #{_heavy_da_call.1} parent=43 // pred_check_branch
          %2155 = sbr.rel (%p2153) target = $region48
        $region47: #{_heavy_da_call.1} parent=43 // pred_region
          %s2157 = ssub.s32 16, 16
          %2158 = vsyncadd %s2150, %s2157
          %s2159 = smul.addr %s20, 16
          %s2160 = scalar_lea.hbm %s6, %s2159
          %s2162 = sshll.u32 %s2152, 4
          %s2163 = int_to_ptr.vmem [resolvable:$true] %s2162
          %2165 = dma.vmem_to_hbm [thread:$0]  %s2163, 16, %s2160, %s2150
        $region48: #{_heavy_da_call.1} parent=43 // pred_fallthru
          _
      $region44: #{_heavy_da_call.1} parent=5 // pred_fallthru
        _
      %p2166 = scmp.le.s32.totalorder 2, %s15
      // Predicated region
      $region49: #{_heavy_da_call.1} parent=5 // pred_check
        %p2167 = pneg %p2166
      $region50: #{_heavy_da_call.1} parent=5 // pred_check_branch
        %2169 = sbr.rel (%p2167) target = $region52
      $region51: #{_heavy_da_call.1} parent=5 // pred_region
        %s2170 = ssub.s32 %s15, 2
        // Predicated region
        $region53: #{_heavy_da_call.1} parent=51 // pred_check
          %p2171 = pneg %p175
        $region54: #{_heavy_da_call.1} parent=51 // pred_check_branch
          %2173 = sbr.rel (%p2171) target = $region56
        $region55: #{_heavy_da_call.1} parent=51 // pred_region
          %s2174 = sand.u32 %s160, 1
          %s2175 = scalar_lea.sflag [#allocation5], %s2174
          %s2176 = sand.u32 %s160, 1
          %s2177 = scalar_lea.vmem [#allocation4], %s2176
          %2178 = dma.done %s2175, 16
        $region56: #{_heavy_da_call.1} parent=51 // pred_fallthru
          _
      $region52: #{_heavy_da_call.1} parent=5 // pred_fallthru
        _
    $region6: #{_heavy_da_call.1} parent=1 // loop_footer
      %s19 = sadd.s32 1, %s15
    $region7: #{_heavy_da_call.1} parent=1 // loop_footer_branch
      %14 = sbr.rel target = $region3
    $region8: #{_heavy_da_call.1} parent=1 // loop_exit
      _
    %2179 = vsyncpa [#allocation5], 1
    %s2180 = scalar_lea.sflag [#allocation5], 1
    %2181 = vsyncpa %s2180, 1

</llo_original>
